<compile_context>
chip_gen: v6e
topology: v6e:2x2x1
jax: 0.10.0
libtpu: 0.0.40
codegen_flags: <defaults>
</compile_context>

<pallas_src>
import jax
import jax.numpy as jnp
from jax.experimental import pallas as pl
from jax.experimental.pallas import tpu as pltpu

H1 = 128       # fc1 width
H2 = 64        # fc2 width (logical)
H2_PAD = 128   # fc2 width padded to a full 128-lane vreg


def mlp_kernel(x_ref, w1_ref, b1_ref, w2_ref, b2_ref, w3_ref, b3_ref, o_ref):
    """One (TB, F) batch tile of the fused MLP.

    x_ref : (TB, F)    bf16  streamed per grid step
    w1_ref: (F, 128)   bf16  resident
    b1_ref: (1, 128)   f32   resident
    w2_ref: (128, 128) bf16  resident (cols 64: zero)
    b2_ref: (1, 128)   f32   resident (cols 64: zero)
    w3_ref: (1, 128)   f32   resident row (entries 64: zero)
    b3_ref: (1, 1)     f32
    o_ref : (TB, 1)    f32
    """
    # fc1 + ReLU: bf16 MXU matmul, f32 accumulate, f32 bias/activation math.
    h1 = jnp.dot(x_ref[...], w1_ref[...], preferred_element_type=jnp.float32)
    h1 = jnp.maximum(h1 + b1_ref[...], 0.0)

    # fc2 + ReLU (hidden padded 64 -> 128 so every h2 vreg is unmasked).
    h2 = jnp.dot(h1.astype(jnp.bfloat16), w2_ref[...],
                 preferred_element_type=jnp.float32)
    h2 = jnp.maximum(h2 + b2_ref[...], 0.0)

    # fc3: an N=1 matmul would use 1/128..1/256 of the MXU output lanes, so do
    # it as a VPU multiply + XLU row-reduce instead (those slots are idle here).
    h3 = jnp.sum(h2 * w3_ref[...], axis=-1, keepdims=True) + b3_ref[...]

    # Sigmoid via EUP exp + approximate EUP reciprocal (keeps the VALU slot clear).
    o_ref[...] = pl.reciprocal(1.0 + jnp.exp(-h3), approx=True).astype(o_ref.dtype)


def _round_up(n, m):
    return (n + m - 1) // m * m


def neural_net_forward(x, packed_params, *, block_rows=512):
    """x: [B, F] float32 (cast to bf16 internally). packed_params: see pack_params."""
    B, F = x.shape
    w1, b1 = packed_params["w1"], packed_params["b1"]
    w2, b2 = packed_params["w2"], packed_params["b2"]
    w3, b3 = packed_params["w3"], packed_params["b3"]

    # Large batch tiles amortize per-grid-step overhead; never larger than the
    # (padded) batch.  Multiple of 16 keeps bf16 sublane packing clean.
    tb = min(block_rows, _round_up(B, 16))
    b_pad = _round_up(B, tb)
    nb = b_pad // tb

    x = x.astype(jnp.bfloat16)                 # halve HBM bytes of the streamed input
    if b_pad != B:
        x = jnp.pad(x, ((0, b_pad - B), (0, 0)))   # tail tile: zero-pad, slice after

    # Weights/biases: same block every grid step -> stay resident in VMEM.
    resident = lambda a: pl.BlockSpec(a.shape, lambda i: (0,) * a.ndim)

    out = pl.pallas_call(
        mlp_kernel,
        out_shape=jax.ShapeDtypeStruct((b_pad, 1), jnp.float32),
        grid_spec=pltpu.PrefetchScalarGridSpec(
            num_scalar_prefetch=0,
            grid=(nb,),
            in_specs=[
                pl.BlockSpec((tb, F), lambda i: (i, 0)),   # streamed x tile
                resident(w1), resident(b1),
                resident(w2), resident(b2),
                resident(w3), resident(b3),
            ],
            out_specs=pl.BlockSpec((tb, 1), lambda i: (i, 0)),
        ),
        # Batch axis is embarrassingly parallel -> megacore sharding on v7x,
        # harmless on single-TC v5e/v6e.  Per-block VMEM is ~150 KB, far under
        # the default scoped limit on every generation, so no vmem_limit_bytes.
        compiler_params=pltpu.CompilerParams(
            dimension_semantics=("parallel",),
        ),
    )(x, w1, b1, w2, b2, w3, b3)

    return out[:B]


def init_params(input_size, key):
    """Deterministic init mimicking torch.nn.Linear default U[-1/sqrt(fan_in), +1/sqrt(fan_in)]."""
    ks = jax.random.split(key, 6)

    def linear(kw, kb, fan_in, fan_out):
        bound = 1.0 / jnp.sqrt(jnp.float32(fan_in))
        w = jax.random.uniform(kw, (fan_in, fan_out), jnp.float32, -bound, bound)
        b = jax.random.uniform(kb, (1, fan_out), jnp.float32, -bound, bound)
        return w, b

    w1, b1 = linear(ks[0], ks[1], input_size, H1)
    w2, b2 = linear(ks[2], ks[3], H1, H2)
    w3, b3 = linear(ks[4], ks[5], H2, 1)
    return {"w1": w1, "b1": b1, "w2": w2, "b2": b2, "w3": w3, "b3": b3}


def pack_params(p):
    """Pad the 64-wide hidden layer to 128 lanes; cast MXU operands to bf16."""
    w1 = p["w1"].astype(jnp.bfloat16)                                        # (F, 128)
    b1 = p["b1"].astype(jnp.float32)                                         # (1, 128)
    w2 = jnp.pad(p["w2"], ((0, 0), (0, H2_PAD - H2))).astype(jnp.bfloat16)   # (128, 128)
    b2 = jnp.pad(p["b2"], ((0, 0), (0, H2_PAD - H2))).astype(jnp.float32)    # (1, 128)
    w3 = jnp.pad(p["w3"], ((0, H2_PAD - H2), (0, 0)))                        # (128, 1)
    w3 = w3.reshape(1, H2_PAD).astype(jnp.float32)                           # row for the VPU reduce
    b3 = p["b3"].astype(jnp.float32)                                         # (1, 1)
    return {"w1": w1, "b1": b1, "w2": w2, "b2": b2, "w3": w3, "b3": b3}


def reference_forward(x, p):
    h1 = jnp.maximum(x @ p["w1"] + p["b1"], 0.0)
    h2 = jnp.maximum(h1 @ p["w2"] + p["b2"], 0.0)
    return jax.nn.sigmoid(h2 @ p["w3"] + p["b3"])


if __name__ == "__main__":
    key = jax.random.PRNGKey(0)
    k_x, k_p = jax.random.split(key)

    # Batch of 1000 with 512-row tiles exercises the multi-block grid AND the
    # ragged-tail padding path while staying tiny (128 KB of input).
    batch, input_size = 1000, 32
    x = jax.random.normal(k_x, (batch, input_size), jnp.float32)

    params = init_params(input_size, k_p)
    packed = pack_params(params)

    out = neural_net_forward(x, packed, block_rows=512)
    out = jax.block_until_ready(out)

    ref = reference_forward(x, params)
    assert out.shape == (batch, 1)
    # bf16 MXU inputs + approximate reciprocal -> compare at bf16-level tolerance.
    assert jnp.allclose(out, ref, atol=2e-2, rtol=2e-2), float(jnp.max(jnp.abs(out - ref)))

    print("KERNEL_OK")
</pallas_src>

<mosaic_0001>
module attributes {stable_mosaic.version = 11 : i64} {
  func.func @mlp_kernel(%arg0: i32, %arg1: memref<512x32xbf16, #tpu.memory_space<vmem>>, %arg2: memref<32x128xbf16, #tpu.memory_space<vmem>>, %arg3: memref<1x128xf32, #tpu.memory_space<vmem>>, %arg4: memref<128x128xbf16, #tpu.memory_space<vmem>>, %arg5: memref<1x128xf32, #tpu.memory_space<vmem>>, %arg6: memref<1x128xf32, #tpu.memory_space<vmem>>, %arg7: memref<1x1xf32, #tpu.memory_space<vmem>>, %arg8: memref<512x1xf32, #tpu.memory_space<vmem>>) attributes {dimension_semantics = [#tpu.dimension_semantics<parallel>], iteration_bounds = array<i64: 2>, scalar_prefetch = 0 : i64, scratch_operands = 0 : i64, tpu.core_type = #tpu.core_type<tc>, window_params = [{transform_indices = @transform_0, window_bounds = array<i64: 512, 32>}, {pipeline_mode = #tpu.pipeline_mode<synchronous>, transform_indices = @transform_1, window_bounds = array<i64: 32, 128>}, {pipeline_mode = #tpu.pipeline_mode<synchronous>, transform_indices = @transform_2, window_bounds = array<i64: 1, 128>}, {pipeline_mode = #tpu.pipeline_mode<synchronous>, transform_indices = @transform_3, window_bounds = array<i64: 128, 128>}, {pipeline_mode = #tpu.pipeline_mode<synchronous>, transform_indices = @transform_4, window_bounds = array<i64: 1, 128>}, {pipeline_mode = #tpu.pipeline_mode<synchronous>, transform_indices = @transform_5, window_bounds = array<i64: 1, 128>}, {pipeline_mode = #tpu.pipeline_mode<synchronous>, transform_indices = @transform_6, window_bounds = array<i64: 1, 1>}, {transform_indices = @transform_7, window_bounds = array<i64: 512, 1>}]} {
    %c0 = arith.constant 0 : index
    %c0_0 = arith.constant 0 : index
    %0 = vector.load %arg1[%c0, %c0_0] : memref<512x32xbf16, #tpu.memory_space<vmem>>, vector<512x32xbf16>
    %c0_1 = arith.constant 0 : index
    %c0_2 = arith.constant 0 : index
    %1 = vector.load %arg2[%c0_1, %c0_2] : memref<32x128xbf16, #tpu.memory_space<vmem>>, vector<32x128xbf16>
    %cst = arith.constant dense<0.000000e+00> : vector<512x128xf32>
    %2 = tpu.matmul %0, %1, %cst {dimension_numbers = #tpu.dot_dimension_numbers<[1], [0], [0], [1], [0, 0, 1, 1], [], []>} : vector<512x32xbf16>, vector<32x128xbf16>, vector<512x128xf32> -> vector<512x128xf32>
    %c0_3 = arith.constant 0 : index
    %c0_4 = arith.constant 0 : index
    %3 = vector.load %arg3[%c0_3, %c0_4] : memref<1x128xf32, #tpu.memory_space<vmem>>, vector<1x128xf32>
    %4 = vector.broadcast %3 : vector<1x128xf32> to vector<512x128xf32>
    %5 = arith.addf %2, %4 : vector<512x128xf32>
    %cst_5 = arith.constant 0.000000e+00 : f32
    %6 = vector.broadcast %cst_5 : f32 to vector<512x128xf32>
    %7 = arith.maximumf %5, %6 : vector<512x128xf32>
    %8 = arith.truncf %7 : vector<512x128xf32> to vector<512x128xbf16>
    %c0_6 = arith.constant 0 : index
    %c0_7 = arith.constant 0 : index
    %9 = vector.load %arg4[%c0_6, %c0_7] : memref<128x128xbf16, #tpu.memory_space<vmem>>, vector<128x128xbf16>
    %cst_8 = arith.constant dense<0.000000e+00> : vector<512x128xf32>
    %10 = tpu.matmul %8, %9, %cst_8 {dimension_numbers = #tpu.dot_dimension_numbers<[1], [0], [0], [1], [0, 0, 1, 1], [], []>} : vector<512x128xbf16>, vector<128x128xbf16>, vector<512x128xf32> -> vector<512x128xf32>
    %c0_9 = arith.constant 0 : index
    %c0_10 = arith.constant 0 : index
    %11 = vector.load %arg5[%c0_9, %c0_10] : memref<1x128xf32, #tpu.memory_space<vmem>>, vector<1x128xf32>
    %12 = vector.broadcast %11 : vector<1x128xf32> to vector<512x128xf32>
    %13 = arith.addf %10, %12 : vector<512x128xf32>
    %cst_11 = arith.constant 0.000000e+00 : f32
    %14 = vector.broadcast %cst_11 : f32 to vector<512x128xf32>
    %15 = arith.maximumf %13, %14 : vector<512x128xf32>
    %c0_12 = arith.constant 0 : index
    %c0_13 = arith.constant 0 : index
    %16 = vector.load %arg6[%c0_12, %c0_13] : memref<1x128xf32, #tpu.memory_space<vmem>>, vector<1x128xf32>
    %17 = vector.broadcast %16 : vector<1x128xf32> to vector<512x128xf32>
    %18 = arith.mulf %15, %17 : vector<512x128xf32>
    %cst_14 = arith.constant dense<0.000000e+00> : vector<512xf32>
    %19 = vector.multi_reduction <add>, %18, %cst_14 [1] : vector<512x128xf32> to vector<512xf32>
    %20 = vector.shape_cast %19 : vector<512xf32> to vector<512x1xf32>
    %c0_15 = arith.constant 0 : index
    %c0_16 = arith.constant 0 : index
    %21 = vector.load %arg7[%c0_15, %c0_16] : memref<1x1xf32, #tpu.memory_space<vmem>>, vector<1x1xf32>
    %22 = vector.broadcast %21 : vector<1x1xf32> to vector<512x1xf32>
    %23 = arith.addf %20, %22 : vector<512x1xf32>
    %cst_17 = arith.constant 0.000000e+00 : f32
    %24 = vector.broadcast %cst_17 : f32 to vector<512x1xf32>
    %25 = arith.subf %24, %23 : vector<512x1xf32>
    %26 = math.exp %25 : vector<512x1xf32>
    %cst_18 = arith.constant 1.000000e+00 : f32
    %27 = vector.broadcast %cst_18 : f32 to vector<512x1xf32>
    %28 = arith.addf %27, %26 : vector<512x1xf32>
    %29 = tpu.reciprocal %28 {approx = true} : vector<512x1xf32> -> vector<512x1xf32>
    %c0_19 = arith.constant 0 : index
    %c0_20 = arith.constant 0 : index
    %30 = vector.load %arg8[%c0_19, %c0_20] : memref<512x1xf32, #tpu.memory_space<vmem>>, vector<512x1xf32>
    tpu.vector_store %arg8[%c0_19, %c0_20], %29 {strides = array<i32>} : memref<512x1xf32, #tpu.memory_space<vmem>>, vector<512x1xf32>,
    return
  }
  func.func @transform_0(%arg0: i32) -> (i32, i32) {
    %c0_i32 = arith.constant 0 : i32
    %c0_i32_0 = arith.constant 0 : i32
    return %arg0, %c0_i32 : i32, i32
  }
  func.func @transform_1(%arg0: i32) -> (i32, i32) {
    %c0_i32 = arith.constant 0 : i32
    %c0_i32_0 = arith.constant 0 : i32
    %c0_i32_1 = arith.constant 0 : i32
    return %c0_i32, %c0_i32_0 : i32, i32
  }
  func.func @transform_2(%arg0: i32) -> (i32, i32) {
    %c0_i32 = arith.constant 0 : i32
    %c0_i32_0 = arith.constant 0 : i32
    %c0_i32_1 = arith.constant 0 : i32
    return %c0_i32, %c0_i32_0 : i32, i32
  }
  func.func @transform_3(%arg0: i32) -> (i32, i32) {
    %c0_i32 = arith.constant 0 : i32
    %c0_i32_0 = arith.constant 0 : i32
    %c0_i32_1 = arith.constant 0 : i32
    return %c0_i32, %c0_i32_0 : i32, i32
  }
  func.func @transform_4(%arg0: i32) -> (i32, i32) {
    %c0_i32 = arith.constant 0 : i32
    %c0_i32_0 = arith.constant 0 : i32
    %c0_i32_1 = arith.constant 0 : i32
    return %c0_i32, %c0_i32_0 : i32, i32
  }
  func.func @transform_5(%arg0: i32) -> (i32, i32) {
    %c0_i32 = arith.constant 0 : i32
    %c0_i32_0 = arith.constant 0 : i32
    %c0_i32_1 = arith.constant 0 : i32
    return %c0_i32, %c0_i32_0 : i32, i32
  }
  func.func @transform_6(%arg0: i32) -> (i32, i32) {
    %c0_i32 = arith.constant 0 : i32
    %c0_i32_0 = arith.constant 0 : i32
    %c0_i32_1 = arith.constant 0 : i32
    return %c0_i32, %c0_i32_0 : i32, i32
  }
  func.func @transform_7(%arg0: i32) -> (i32, i32) {
    %c0_i32 = arith.constant 0 : i32
    %c0_i32_0 = arith.constant 0 : i32
    return %arg0, %c0_i32 : i32, i32
  }
}

</mosaic_0001>

<llo_original>
// kernel: tpu_custom_call.1
$region0: #{tpu_custom_call.1}
  #allocation0 [shape = 'u32[]', space=smem, size = 0x4, offset = 0x4, fixed_abs, tag = 'smem constant byte address 0x4 - core index']
  #allocation1 [shape = 'u32[144,128]{1,0:T(1,128)}', space=vmem, size = 0x12000, scoped, tag = 'internal scratch']
  #allocation2 [shape = 'f32[1,1]{1,0:T(1,128)S(1)}', space=vmem, size = 0x200, scoped, tag = 'scoped memory for tpu_custom_call.1']
  %s0 = inlined_call_operand.vmem [shape: bf16[1024,32], index: 0, kind: input, shape index: {}]
  %s1 = inlined_call_operand.vmem [shape: bf16[32,128], index: 1, kind: input, shape index: {}]
  %s2 = inlined_call_operand.vmem [shape: f32[1,128], index: 2, kind: input, shape index: {}]
  %s3 = inlined_call_operand.vmem [shape: bf16[128,128], index: 3, kind: input, shape index: {}]
  %s4 = inlined_call_operand.vmem [shape: f32[1,128], index: 4, kind: input, shape index: {}]
  %s5 = inlined_call_operand.vmem [shape: f32[1,128], index: 5, kind: input, shape index: {}]
  %s6 = inlined_call_operand.<no memory space> [shape: f32[1,1], index: 6, kind: input, shape index: {}]
  %s7 = inlined_call_operand.vmem [shape: f32[1024,1], index: 7, kind: output, shape index: {}]
  %s8 = sld [smem:[#allocation0]]
  $region61: #{tpu_custom_call.1} parent=0
    _
  %s10 = ssub.s32 1, %s8
  %s11 = scalar_select 0, %s10, %s8
  %v12 = vstv %s6
  %13 = vst [vmem:[#allocation2] sm:$0x1] %v12
  loop: start=0, step=1, limit=4
  $region2: #{tpu_custom_call.1} parent=0 // loop_pre_header
    _
  $region3: #{tpu_custom_call.1} parent=0 // loop_header
    %s15 = sphi 0, %s19
    %p16 = scmp.ge.s32.totalorder %s15, 4
    %s25 = sphi 0, %s27
    %s28 = sphi 0, %s25
    %s29 = sphi 0, %s28
    %s45 = sphi 0, %s29
    %s49 = sphi 0, %s49
    %s51 = sphi 0, %s49
    %s52 = sphi 0, %s51
    %s66 = sphi 0, %s52
    %s70 = sphi 0, %s70
    %s72 = sphi 0, %s70
    %s73 = sphi 0, %s72
    %s87 = sphi 0, %s73
    %s91 = sphi 0, %s91
    %s93 = sphi 0, %s91
    %s94 = sphi 0, %s93
    %s108 = sphi 0, %s94
    %s112 = sphi 0, %s112
    %s114 = sphi 0, %s112
    %s115 = sphi 0, %s114
    %s129 = sphi 0, %s115
    %s133 = sphi 0, %s133
    %s135 = sphi 0, %s133
    %s136 = sphi 0, %s135
    %s150 = sphi 0, %s136
    %s154 = sphi 0, %s154
    %s156 = sphi 0, %s154
    %s157 = sphi 0, %s156
    %s171 = sphi 0, %s157
    %s177 = sphi 0, %s179
    %s180 = sphi 0, %s177
    %s181 = sphi 0, %s180
    %s197 = sphi 0, %s181
  $region4: #{tpu_custom_call.1} parent=0 // loop_header_branch
    %18 = sbr.rel (%p16) target = $region8
  $region5: #{tpu_custom_call.1} parent=0 // loop_body
    %s20 = ssub.s32 %s15, 1
    %s21 = ssub.s32 %s15, 2
    %s22 = sadd.s32 %s15, 1
    %s23 = ssub.s32 %s15, %s22
    %p24 = scmp.eq.s32.totalorder %s23, 0
    %s26 = sadd.s32 %s25, 1
    %s27 = scalar_select %p24, %s25, %s26
    %p30 = pneg %p24
    %p31 = scmp.eq.s32.totalorder %s15, 1
    %p32 = por %p30, %p31
    %p33 = scmp.ne.s32.totalorder %s25, %s28
    %p34 = scmp.eq.s32.totalorder %s15, 0
    %p35 = por %p33, %p34
    %p36 = scmp.ne.s32.totalorder %s25, %s28
    %p37 = scmp.eq.s32.totalorder %s20, 1
    %p38 = por %p36, %p37
    %p39 = scmp.ne.s32.totalorder %s28, %s29
    %p40 = scmp.eq.s32.totalorder %s20, 0
    %p41 = por %p39, %p40
    %p42 = scmp.ne.s32.totalorder %s28, %s29
    %p43 = scmp.eq.s32.totalorder %s21, 1
    %p44 = por %p42, %p43
    %p46 = scmp.ne.s32.totalorder %s29, %s45
    %p47 = scmp.eq.s32.totalorder %s21, 0
    %p48 = por %p46, %p47
    %s50 = sadd.s32 %s49, 1
    %p53 = scmp.eq.s32.totalorder %s15, 1
    %p54 = scmp.ne.s32.totalorder %s49, %s51
    %p55 = scmp.eq.s32.totalorder %s15, 0
    %p56 = por %p54, %p55
    %p57 = scmp.ne.s32.totalorder %s49, %s51
    %p58 = scmp.eq.s32.totalorder %s20, 1
    %p59 = por %p57, %p58
    %p60 = scmp.ne.s32.totalorder %s51, %s52
    %p61 = scmp.eq.s32.totalorder %s20, 0
    %p62 = por %p60, %p61
    %p63 = scmp.ne.s32.totalorder %s51, %s52
    %p64 = scmp.eq.s32.totalorder %s21, 1
    %p65 = por %p63, %p64
    %p67 = scmp.ne.s32.totalorder %s52, %s66
    %p68 = scmp.eq.s32.totalorder %s21, 0
    %p69 = por %p67, %p68
    %s71 = sadd.s32 %s70, 1
    %p74 = scmp.eq.s32.totalorder %s15, 1
    %p75 = scmp.ne.s32.totalorder %s70, %s72
    %p76 = scmp.eq.s32.totalorder %s15, 0
    %p77 = por %p75, %p76
    %p78 = scmp.ne.s32.totalorder %s70, %s72
    %p79 = scmp.eq.s32.totalorder %s20, 1
    %p80 = por %p78, %p79
    %p81 = scmp.ne.s32.totalorder %s72, %s73
    %p82 = scmp.eq.s32.totalorder %s20, 0
    %p83 = por %p81, %p82
    %p84 = scmp.ne.s32.totalorder %s72, %s73
    %p85 = scmp.eq.s32.totalorder %s21, 1
    %p86 = por %p84, %p85
    %p88 = scmp.ne.s32.totalorder %s73, %s87
    %p89 = scmp.eq.s32.totalorder %s21, 0
    %p90 = por %p88, %p89
    %s92 = sadd.s32 %s91, 1
    %p95 = scmp.eq.s32.totalorder %s15, 1
    %p96 = scmp.ne.s32.totalorder %s91, %s93
    %p97 = scmp.eq.s32.totalorder %s15, 0
    %p98 = por %p96, %p97
    %p99 = scmp.ne.s32.totalorder %s91, %s93
    %p100 = scmp.eq.s32.totalorder %s20, 1
    %p101 = por %p99, %p100
    %p102 = scmp.ne.s32.totalorder %s93, %s94
    %p103 = scmp.eq.s32.totalorder %s20, 0
    %p104 = por %p102, %p103
    %p105 = scmp.ne.s32.totalorder %s93, %s94
    %p106 = scmp.eq.s32.totalorder %s21, 1
    %p107 = por %p105, %p106
    %p109 = scmp.ne.s32.totalorder %s94, %s108
    %p110 = scmp.eq.s32.totalorder %s21, 0
    %p111 = por %p109, %p110
    %s113 = sadd.s32 %s112, 1
    %p116 = scmp.eq.s32.totalorder %s15, 1
    %p117 = scmp.ne.s32.totalorder %s112, %s114
    %p118 = scmp.eq.s32.totalorder %s15, 0
    %p119 = por %p117, %p118
    %p120 = scmp.ne.s32.totalorder %s112, %s114
    %p121 = scmp.eq.s32.totalorder %s20, 1
    %p122 = por %p120, %p121
    %p123 = scmp.ne.s32.totalorder %s114, %s115
    %p124 = scmp.eq.s32.totalorder %s20, 0
    %p125 = por %p123, %p124
    %p126 = scmp.ne.s32.totalorder %s114, %s115
    %p127 = scmp.eq.s32.totalorder %s21, 1
    %p128 = por %p126, %p127
    %p130 = scmp.ne.s32.totalorder %s115, %s129
    %p131 = scmp.eq.s32.totalorder %s21, 0
    %p132 = por %p130, %p131
    %s134 = sadd.s32 %s133, 1
    %p137 = scmp.eq.s32.totalorder %s15, 1
    %p138 = scmp.ne.s32.totalorder %s133, %s135
    %p139 = scmp.eq.s32.totalorder %s15, 0
    %p140 = por %p138, %p139
    %p141 = scmp.ne.s32.totalorder %s133, %s135
    %p142 = scmp.eq.s32.totalorder %s20, 1
    %p143 = por %p141, %p142
    %p144 = scmp.ne.s32.totalorder %s135, %s136
    %p145 = scmp.eq.s32.totalorder %s20, 0
    %p146 = por %p144, %p145
    %p147 = scmp.ne.s32.totalorder %s135, %s136
    %p148 = scmp.eq.s32.totalorder %s21, 1
    %p149 = por %p147, %p148
    %p151 = scmp.ne.s32.totalorder %s136, %s150
    %p152 = scmp.eq.s32.totalorder %s21, 0
    %p153 = por %p151, %p152
    %s155 = sadd.s32 %s154, 1
    %p158 = scmp.eq.s32.totalorder %s15, 1
    %p159 = scmp.ne.s32.totalorder %s154, %s156
    %p160 = scmp.eq.s32.totalorder %s15, 0
    %p161 = por %p159, %p160
    %p162 = scmp.ne.s32.totalorder %s154, %s156
    %p163 = scmp.eq.s32.totalorder %s20, 1
    %p164 = por %p162, %p163
    %p165 = scmp.ne.s32.totalorder %s156, %s157
    %p166 = scmp.eq.s32.totalorder %s20, 0
    %p167 = por %p165, %p166
    %p168 = scmp.ne.s32.totalorder %s156, %s157
    %p169 = scmp.eq.s32.totalorder %s21, 1
    %p170 = por %p168, %p169
    %p172 = scmp.ne.s32.totalorder %s157, %s171
    %p173 = scmp.eq.s32.totalorder %s21, 0
    %p174 = por %p172, %p173
    %s175 = ssub.s32 %s15, %s22
    %p176 = scmp.eq.s32.totalorder %s175, 0
    %s178 = sadd.s32 %s177, 1
    %s179 = scalar_select %p176, %s177, %s178
    %p182 = pneg %p176
    %p183 = scmp.eq.s32.totalorder %s15, 1
    %p184 = por %p182, %p183
    %p185 = scmp.ne.s32.totalorder %s177, %s180
    %p186 = scmp.eq.s32.totalorder %s15, 0
    %p187 = por %p185, %p186
    %p188 = scmp.ne.s32.totalorder %s177, %s180
    %p189 = scmp.eq.s32.totalorder %s20, 1
    %p190 = por %p188, %p189
    %p191 = scmp.ne.s32.totalorder %s180, %s181
    %p192 = scmp.eq.s32.totalorder %s20, 0
    %p193 = por %p191, %p192
    %p194 = scmp.ne.s32.totalorder %s180, %s181
    %p195 = scmp.eq.s32.totalorder %s21, 1
    %p196 = por %p194, %p195
    %p198 = scmp.ne.s32.totalorder %s181, %s197
    %p199 = scmp.eq.s32.totalorder %s21, 0
    %p200 = por %p198, %p199
    %p201 = scmp.le.s32.totalorder 1, %s15
    %p202 = scmp.lt.s32.totalorder %s15, 3
    %p203 = pnand %p201, %p202
    %p204 = pneg %p203
    // Predicated region
    $region9: #{tpu_custom_call.1} parent=5 // pred_check
      _
    $region10: #{tpu_custom_call.1} parent=5 // pred_check_branch
      %206 = sbr.rel (%p203) target = $region12
    $region11: #{tpu_custom_call.1} parent=5 // pred_region
      %s207 = ssub.s32 %s15, 1
      // Predicated region
      $region13: #{tpu_custom_call.1} parent=11 // pred_check
        %p208 = pneg %p62
      $region14: #{tpu_custom_call.1} parent=11 // pred_check_branch
        %210 = sbr.rel (%p208) target = $region16
      $region15: #{tpu_custom_call.1} parent=11 // pred_region
        _
      $region16: #{tpu_custom_call.1} parent=11 // pred_fallthru
        _
      // Predicated region
      $region17: #{tpu_custom_call.1} parent=11 // pred_check
        %p211 = pneg %p83
      $region18: #{tpu_custom_call.1} parent=11 // pred_check_branch
        %213 = sbr.rel (%p211) target = $region20
      $region19: #{tpu_custom_call.1} parent=11 // pred_region
        _
      $region20: #{tpu_custom_call.1} parent=11 // pred_fallthru
        _
      // Predicated region
      $region21: #{tpu_custom_call.1} parent=11 // pred_check
        %p214 = pneg %p104
      $region22: #{tpu_custom_call.1} parent=11 // pred_check_branch
        %216 = sbr.rel (%p214) target = $region24
      $region23: #{tpu_custom_call.1} parent=11 // pred_region
        _
      $region24: #{tpu_custom_call.1} parent=11 // pred_fallthru
        _
      // Predicated region
      $region25: #{tpu_custom_call.1} parent=11 // pred_check
        %p217 = pneg %p125
      $region26: #{tpu_custom_call.1} parent=11 // pred_check_branch
        %219 = sbr.rel (%p217) target = $region28
      $region27: #{tpu_custom_call.1} parent=11 // pred_region
        _
      $region28: #{tpu_custom_call.1} parent=11 // pred_fallthru
        _
      // Predicated region
      $region29: #{tpu_custom_call.1} parent=11 // pred_check
        %p220 = pneg %p146
      $region30: #{tpu_custom_call.1} parent=11 // pred_check_branch
        %222 = sbr.rel (%p220) target = $region32
      $region31: #{tpu_custom_call.1} parent=11 // pred_region
        _
      $region32: #{tpu_custom_call.1} parent=11 // pred_fallthru
        _
      // Predicated region
      $region33: #{tpu_custom_call.1} parent=11 // pred_check
        %p223 = pneg %p167
      $region34: #{tpu_custom_call.1} parent=11 // pred_check_branch
        %225 = sbr.rel (%p223) target = $region36
      $region35: #{tpu_custom_call.1} parent=11 // pred_region
        _
      $region36: #{tpu_custom_call.1} parent=11 // pred_fallthru
        _
    $region12: #{tpu_custom_call.1} parent=5 // pred_fallthru
      _
    %p226 = scmp.lt.s32.totalorder %s15, 2
    // Predicated region
    $region37: #{tpu_custom_call.1} parent=5 // pred_check
      %p227 = pneg %p226
    $region38: #{tpu_custom_call.1} parent=5 // pred_check_branch
      %229 = sbr.rel (%p227) target = $region40
    $region39: #{tpu_custom_call.1} parent=5 // pred_region
      // Predicated region
      $region41: #{tpu_custom_call.1} parent=39 // pred_check
        %p230 = pneg %p35
      $region42: #{tpu_custom_call.1} parent=39 // pred_check_branch
        %232 = sbr.rel (%p230) target = $region44
      $region43: #{tpu_custom_call.1} parent=39 // pred_region
        %s233 = smul.u32 64, %s15
        %p234 = scmp.lt.s32.totalorder %s233, 127
        %s235 = scalar_select %p234, %s233, 127
        %s236 = smul.addr %s235, 4
        %s237 = scalar_lea.vmem %s0, %s236
        %s238 = smul.u32 64, %s15
      $region44: #{tpu_custom_call.1} parent=39 // pred_fallthru
        _
    $region40: #{tpu_custom_call.1} parent=5 // pred_fallthru
      _
    %p239 = scmp.le.s32.totalorder 1, %s15
    %p240 = scmp.lt.s32.totalorder %s15, 3
    %p241 = pnand %p239, %p240
    %p242 = pneg %p241
    // Predicated region
    $region45: #{tpu_custom_call.1} parent=5 // pred_check
      _
    $region46: #{tpu_custom_call.1} parent=5 // pred_check_branch
      %244 = sbr.rel (%p241) target = $region48
    $region47: #{tpu_custom_call.1} parent=5 // pred_region
      %s245 = ssub.s32 %s15, 1
      %s246 = smul.u32 64, %s20
      %p247 = scmp.lt.s32.totalorder %s246, 127
      %s248 = scalar_select %p247, %s246, 127
      %s249 = smul.addr %s248, 4
      %s250 = scalar_lea.vmem %s0, %s249
      %p251 = pneg %p41
      %p252 = pneg %p38
      %p253 = pneg %p62
      %p254 = pneg %p59
      %p255 = pneg %p83
      %p256 = pneg %p80
      %p257 = pneg %p104
      %p258 = pneg %p101
      %p259 = pneg %p125
      %p260 = pneg %p122
      %p261 = pneg %p146
      %p262 = pneg %p143
      %p263 = pneg %p167
      %p264 = pneg %p164
      %p265 = pneg %p193
      %p266 = pneg %p190
      %s267 = smul.u32 64, %s20
      %p268 = scmp.lt.s32.totalorder %s267, 127
      %s269 = scalar_select %p268, %s267, 127
      %s270 = smul.addr %s269, 8
      %s271 = scalar_lea.vmem %s7, %s270
      %s272 = smul.u32 64, %s20
      %p273 = scmp.lt.s32.totalorder %s272, 127
      %s274 = scalar_select %p273, %s272, 127
      %s275 = smul.addr %s274, 4
      %s276 = scalar_lea.vmem %s0, %s275
      %s277 = smul.u32 64, %s20
      %s278 = smul.u32 64, %s20
      %p279 = scmp.lt.s32.totalorder %s278, 127
      %s280 = scalar_select %p279, %s278, 127
      %s281 = smul.addr %s280, 8
      %s282 = scalar_lea.vmem %s7, %s281
      %s283 = smul.u32 64, %s20
      %v285 = vld [vmem:[%s276] sm:$0xf]
      %v286 = vld [vmem:[%s276 + $0x4] sm:$0xf]
      %v287 = vld [vmem:[%s276 + $0x8] sm:$0xf]
      %v288 = vld [vmem:[%s276 + $0xc] sm:$0xf]
      %v289 = vld [vmem:[%s276 + $0x10] sm:$0xf]
      %v290 = vld [vmem:[%s276 + $0x14] sm:$0xf]
      %v291 = vld [vmem:[%s276 + $0x18] sm:$0xf]
      %v292 = vld [vmem:[%s276 + $0x1c] sm:$0xf]
      %v293 = vld [vmem:[%s276 + $0x20] sm:$0xf]
      %v294 = vld [vmem:[%s276 + $0x24] sm:$0xf]
      %v295 = vld [vmem:[%s276 + $0x28] sm:$0xf]
      %v296 = vld [vmem:[%s276 + $0x2c] sm:$0xf]
      %v297 = vld [vmem:[%s276 + $0x30] sm:$0xf]
      %v298 = vld [vmem:[%s276 + $0x34] sm:$0xf]
      %v299 = vld [vmem:[%s276 + $0x38] sm:$0xf]
      %v300 = vld [vmem:[%s276 + $0x3c] sm:$0xf]
      %v301 = vld [vmem:[%s276 + $0x40] sm:$0xf]
      %v302 = vld [vmem:[%s276 + $0x44] sm:$0xf]
      %v303 = vld [vmem:[%s276 + $0x48] sm:$0xf]
      %v304 = vld [vmem:[%s276 + $0x4c] sm:$0xf]
      %v305 = vld [vmem:[%s276 + $0x50] sm:$0xf]
      %v306 = vld [vmem:[%s276 + $0x54] sm:$0xf]
      %v307 = vld [vmem:[%s276 + $0x58] sm:$0xf]
      %v308 = vld [vmem:[%s276 + $0x5c] sm:$0xf]
      %v309 = vld [vmem:[%s276 + $0x60] sm:$0xf]
      %v310 = vld [vmem:[%s276 + $0x64] sm:$0xf]
      %v311 = vld [vmem:[%s276 + $0x68] sm:$0xf]
      %v312 = vld [vmem:[%s276 + $0x6c] sm:$0xf]
      %v313 = vld [vmem:[%s276 + $0x70] sm:$0xf]
      %v314 = vld [vmem:[%s276 + $0x74] sm:$0xf]
      %v315 = vld [vmem:[%s276 + $0x78] sm:$0xf]
      %v316 = vld [vmem:[%s276 + $0x7c] sm:$0xf]
      %v317 = vld [vmem:[%s276 + $0x80] sm:$0xf]
      %v318 = vld [vmem:[%s276 + $0x84] sm:$0xf]
      %v319 = vld [vmem:[%s276 + $0x88] sm:$0xf]
      %v320 = vld [vmem:[%s276 + $0x8c] sm:$0xf]
      %v321 = vld [vmem:[%s276 + $0x90] sm:$0xf]
      %v322 = vld [vmem:[%s276 + $0x94] sm:$0xf]
      %v323 = vld [vmem:[%s276 + $0x98] sm:$0xf]
      %v324 = vld [vmem:[%s276 + $0x9c] sm:$0xf]
      %v325 = vld [vmem:[%s276 + $0xa0] sm:$0xf]
      %v326 = vld [vmem:[%s276 + $0xa4] sm:$0xf]
      %v327 = vld [vmem:[%s276 + $0xa8] sm:$0xf]
      %v328 = vld [vmem:[%s276 + $0xac] sm:$0xf]
      %v329 = vld [vmem:[%s276 + $0xb0] sm:$0xf]
      %v330 = vld [vmem:[%s276 + $0xb4] sm:$0xf]
      %v331 = vld [vmem:[%s276 + $0xb8] sm:$0xf]
      %v332 = vld [vmem:[%s276 + $0xbc] sm:$0xf]
      %v333 = vld [vmem:[%s276 + $0xc0] sm:$0xf]
      %v334 = vld [vmem:[%s276 + $0xc4] sm:$0xf]
      %v335 = vld [vmem:[%s276 + $0xc8] sm:$0xf]
      %v336 = vld [vmem:[%s276 + $0xcc] sm:$0xf]
      %v337 = vld [vmem:[%s276 + $0xd0] sm:$0xf]
      %v338 = vld [vmem:[%s276 + $0xd4] sm:$0xf]
      %v339 = vld [vmem:[%s276 + $0xd8] sm:$0xf]
      %v340 = vld [vmem:[%s276 + $0xdc] sm:$0xf]
      %v341 = vld [vmem:[%s276 + $0xe0] sm:$0xf]
      %v342 = vld [vmem:[%s276 + $0xe4] sm:$0xf]
      %v343 = vld [vmem:[%s276 + $0xe8] sm:$0xf]
      %v344 = vld [vmem:[%s276 + $0xec] sm:$0xf]
      %v345 = vld [vmem:[%s276 + $0xf0] sm:$0xf]
      %v346 = vld [vmem:[%s276 + $0xf4] sm:$0xf]
      %v347 = vld [vmem:[%s276 + $0xf8] sm:$0xf]
      %v348 = vld [vmem:[%s276 + $0xfc] sm:$0xf]
      %v349 = vld [vmem:[%s1] sm:$0xf]
      %v350 = vld [vmem:[%s1 + $0x4] sm:$0xf]
      %v351 = vld [vmem:[%s1 + $0x8] sm:$0xf]
      %v352 = vld [vmem:[%s1 + $0xc] sm:$0xf]
      %v353 = vld [vmem:[%s2] sm:$0x1]
      %v355 = vlaneseq
      %v356 = vshrl.u32 %v355, 7
      %v357 = vsub.s32 0, %v356
      %v358 = vrot.slane %v353, %v357
      %v424 = vunpack.c.l.b16 %v285
      %v425 = vunpack.c.l.b16 %v286
      %v426 = vunpack.c.l.b16 %v287
      %v427 = vunpack.c.l.b16 %v288
      %v428 = vunpack.c.l.b16 %v289
      %v429 = vunpack.c.l.b16 %v290
      %v430 = vunpack.c.l.b16 %v291
      %v431 = vunpack.c.l.b16 %v292
      %v432 = vunpack.c.l.b16 %v293
      %v433 = vunpack.c.l.b16 %v294
      %v434 = vunpack.c.l.b16 %v295
      %v435 = vunpack.c.l.b16 %v296
      %v436 = vunpack.c.l.b16 %v297
      %v437 = vunpack.c.l.b16 %v298
      %v438 = vunpack.c.l.b16 %v299
      %v439 = vunpack.c.l.b16 %v300
      %v440 = vunpack.c.l.b16 %v301
      %v441 = vunpack.c.l.b16 %v302
      %v442 = vunpack.c.l.b16 %v303
      %v443 = vunpack.c.l.b16 %v304
      %v444 = vunpack.c.l.b16 %v305
      %v445 = vunpack.c.l.b16 %v306
      %v446 = vunpack.c.l.b16 %v307
      %v447 = vunpack.c.l.b16 %v308
      %v448 = vunpack.c.l.b16 %v309
      %v449 = vunpack.c.l.b16 %v310
      %v450 = vunpack.c.l.b16 %v311
      %v451 = vunpack.c.l.b16 %v312
      %v452 = vunpack.c.l.b16 %v313
      %v453 = vunpack.c.l.b16 %v314
      %v454 = vunpack.c.l.b16 %v315
      %v455 = vunpack.c.l.b16 %v316
      %v456 = vunpack.c.l.b16 %v317
      %v457 = vunpack.c.l.b16 %v318
      %v458 = vunpack.c.l.b16 %v319
      %v459 = vunpack.c.l.b16 %v320
      %v460 = vunpack.c.l.b16 %v321
      %v461 = vunpack.c.l.b16 %v322
      %v462 = vunpack.c.l.b16 %v323
      %v463 = vunpack.c.l.b16 %v324
      %v464 = vunpack.c.l.b16 %v325
      %v465 = vunpack.c.l.b16 %v326
      %v466 = vunpack.c.l.b16 %v327
      %v467 = vunpack.c.l.b16 %v328
      %v468 = vunpack.c.l.b16 %v329
      %v469 = vunpack.c.l.b16 %v330
      %v470 = vunpack.c.l.b16 %v331
      %v471 = vunpack.c.l.b16 %v332
      %v472 = vunpack.c.l.b16 %v333
      %v473 = vunpack.c.l.b16 %v334
      %v474 = vunpack.c.l.b16 %v335
      %v475 = vunpack.c.l.b16 %v336
      %v476 = vunpack.c.l.b16 %v337
      %v477 = vunpack.c.l.b16 %v338
      %v478 = vunpack.c.l.b16 %v339
      %v479 = vunpack.c.l.b16 %v340
      %v480 = vunpack.c.l.b16 %v341
      %v481 = vunpack.c.l.b16 %v342
      %v482 = vunpack.c.l.b16 %v343
      %v483 = vunpack.c.l.b16 %v344
      %v484 = vunpack.c.l.b16 %v345
      %v485 = vunpack.c.l.b16 %v346
      %v486 = vunpack.c.l.b16 %v347
      %v487 = vunpack.c.l.b16 %v348
      %v488 = vpack.c.b16 %v425, %v424
      %v489 = vpack.c.b16 %v427, %v426
      %v490 = vpack.c.b16 %v429, %v428
      %v491 = vpack.c.b16 %v431, %v430
      %v492 = vpack.c.b16 %v433, %v432
      %v493 = vpack.c.b16 %v435, %v434
      %v494 = vpack.c.b16 %v437, %v436
      %v495 = vpack.c.b16 %v439, %v438
      %v496 = vpack.c.b16 %v441, %v440
      %v497 = vpack.c.b16 %v443, %v442
      %v498 = vpack.c.b16 %v445, %v444
      %v499 = vpack.c.b16 %v447, %v446
      %v500 = vpack.c.b16 %v449, %v448
      %v501 = vpack.c.b16 %v451, %v450
      %v502 = vpack.c.b16 %v453, %v452
      %v503 = vpack.c.b16 %v455, %v454
      %v504 = vpack.c.b16 %v457, %v456
      %v505 = vpack.c.b16 %v459, %v458
      %v506 = vpack.c.b16 %v461, %v460
      %v507 = vpack.c.b16 %v463, %v462
      %v508 = vpack.c.b16 %v465, %v464
      %v509 = vpack.c.b16 %v467, %v466
      %v510 = vpack.c.b16 %v469, %v468
      %v511 = vpack.c.b16 %v471, %v470
      %v512 = vpack.c.b16 %v473, %v472
      %v513 = vpack.c.b16 %v475, %v474
      %v514 = vpack.c.b16 %v477, %v476
      %v515 = vpack.c.b16 %v479, %v478
      %v516 = vpack.c.b16 %v481, %v480
      %v517 = vpack.c.b16 %v483, %v482
      %v518 = vpack.c.b16 %v485, %v484
      %v519 = vpack.c.b16 %v487, %v486
      %v524 = vunpack.c.l.b16 %v349
      %v525 = vunpack.c.l.b16 %v350
      %v526 = vunpack.c.l.b16 %v351
      %v527 = vunpack.c.l.b16 %v352
      %v528 = vpack.c.b16 %v525, %v524
      %v529 = vpack.c.b16 %v527, %v526
      %vm532 = vcmask 261120
      %v534 = vsel %vm532, %v488, 0
      %v537 = vsel %vm532, %v489, 0
      %v540 = vsel %vm532, %v490, 0
      %v543 = vsel %vm532, %v491, 0
      %v546 = vsel %vm532, %v492, 0
      %v549 = vsel %vm532, %v493, 0
      %v552 = vsel %vm532, %v494, 0
      %v555 = vsel %vm532, %v495, 0
      %v558 = vsel %vm532, %v496, 0
      %v561 = vsel %vm532, %v497, 0
      %v564 = vsel %vm532, %v498, 0
      %v567 = vsel %vm532, %v499, 0
      %v570 = vsel %vm532, %v500, 0
      %v573 = vsel %vm532, %v501, 0
      %v576 = vsel %vm532, %v502, 0
      %v579 = vsel %vm532, %v503, 0
      %v582 = vsel %vm532, %v504, 0
      %v585 = vsel %vm532, %v505, 0
      %v588 = vsel %vm532, %v506, 0
      %v591 = vsel %vm532, %v507, 0
      %v594 = vsel %vm532, %v508, 0
      %v597 = vsel %vm532, %v509, 0
      %v600 = vsel %vm532, %v510, 0
      %v603 = vsel %vm532, %v511, 0
      %v606 = vsel %vm532, %v512, 0
      %v609 = vsel %vm532, %v513, 0
      %v612 = vsel %vm532, %v514, 0
      %v615 = vsel %vm532, %v515, 0
      %v618 = vsel %vm532, %v516, 0
      %v621 = vsel %vm532, %v517, 0
      %v624 = vsel %vm532, %v518, 0
      %v627 = vsel %vm532, %v519, 0
      %629 = vmatprep.subr.bf16.mxu0 0
      %630 = vmatpush1.bf16.msra.mxu0 0
      %631 = vmatprep.subr.bf16.mxu0 0
      %632 = vmatpush1.bf16.msra.mxu0 0
      %633 = vmatprep.subr.bf16.mxu0 0
      %634 = vmatpush1.bf16.msra.mxu0 0
      %635 = vmatprep.subr.bf16.mxu0 0
      %636 = vmatpush1.bf16.msra.mxu0 0
      %637 = vmatprep.subr.bf16.mxu0 0
      %638 = vmatpush1.bf16.msra.mxu0 0
      %639 = vmatprep.subr.bf16.mxu0 0
      %640 = vmatpush1.bf16.msra.mxu0 0
      %641 = vmatprep.subr.bf16.mxu0 0
      %642 = vmatpush1.bf16.msra.mxu0 %v529
      %643 = vmatprep.subr.bf16.mxu0 0
      %644 = vmatpush1.bf16.msra.mxu0 %v528
      %645 = vmatprep.subr.bf16.mxu0 0
      %646 = vmatpush2.bf16.msra.mxu0 0
      %647 = vmatprep.subr.bf16.mxu0 0
      %648 = vmatpush2.bf16.msra.mxu0 0
      %649 = vmatprep.subr.bf16.mxu0 0
      %650 = vmatpush2.bf16.msra.mxu0 0
      %651 = vmatprep.subr.bf16.mxu0 0
      %652 = vmatpush2.bf16.msra.mxu0 0
      %653 = vmatprep.subr.bf16.mxu0 0
      %654 = vmatpush2.bf16.msra.mxu0 0
      %655 = vmatprep.subr.bf16.mxu0 0
      %656 = vmatpush2.bf16.msra.mxu0 0
      %657 = vmatprep.subr.bf16.mxu0 0
      %658 = vmatpush2.bf16.msra.mxu0 0
      %659 = vmatprep.subr.bf16.mxu0 0
      %660 = vmatpush2.bf16.msra.mxu0 0
      %661 = vmatprep.mubr.bf16.mxu0 0
      %662 = vmatmul.mubr.bf16.gmra.mxu0 %v534
      %v663 = vpop.f32.mrf.mxu0
      %v664 = vadd.f32 %v358, %v663
      %v665 = vpop.f32.mrf.mxu0
      %v666 = vpop.f32.mrf.mxu0
      %v667 = vadd.f32 %v358, %v666
      %v668 = vpop.f32.mrf.mxu0
      %669 = vmatprep.mubr.bf16.mxu0 0
      %670 = vmatmul.mubr.bf16.gmra.mxu0 %v537
      %v671 = vpop.f32.mrf.mxu0
      %v672 = vadd.f32 %v358, %v671
      %v673 = vpop.f32.mrf.mxu0
      %v674 = vpop.f32.mrf.mxu0
      %v675 = vadd.f32 %v358, %v674
      %v676 = vpop.f32.mrf.mxu0
      %677 = vmatprep.mubr.bf16.mxu0 0
      %678 = vmatmul.mubr.bf16.gmra.mxu0 %v540
      %v679 = vpop.f32.mrf.mxu0
      %v680 = vadd.f32 %v358, %v679
      %v681 = vpop.f32.mrf.mxu0
      %v682 = vpop.f32.mrf.mxu0
      %v683 = vadd.f32 %v358, %v682
      %v684 = vpop.f32.mrf.mxu0
      %685 = vmatprep.mubr.bf16.mxu0 0
      %686 = vmatmul.mubr.bf16.gmra.mxu0 %v543
      %v687 = vpop.f32.mrf.mxu0
      %v688 = vadd.f32 %v358, %v687
      %v689 = vpop.f32.mrf.mxu0
      %v690 = vpop.f32.mrf.mxu0
      %v691 = vadd.f32 %v358, %v690
      %v692 = vpop.f32.mrf.mxu0
      %693 = vmatprep.mubr.bf16.mxu0 0
      %694 = vmatmul.mubr.bf16.gmra.mxu0 %v546
      %v695 = vpop.f32.mrf.mxu0
      %v696 = vadd.f32 %v358, %v695
      %v697 = vpop.f32.mrf.mxu0
      %v698 = vpop.f32.mrf.mxu0
      %v699 = vadd.f32 %v358, %v698
      %v700 = vpop.f32.mrf.mxu0
      %701 = vmatprep.mubr.bf16.mxu0 0
      %702 = vmatmul.mubr.bf16.gmra.mxu0 %v549
      %v703 = vpop.f32.mrf.mxu0
      %v704 = vadd.f32 %v358, %v703
      %v705 = vpop.f32.mrf.mxu0
      %v706 = vpop.f32.mrf.mxu0
      %v707 = vadd.f32 %v358, %v706
      %v708 = vpop.f32.mrf.mxu0
      %709 = vmatprep.mubr.bf16.mxu0 0
      %710 = vmatmul.mubr.bf16.gmra.mxu0 %v552
      %v711 = vpop.f32.mrf.mxu0
      %v712 = vadd.f32 %v358, %v711
      %v713 = vpop.f32.mrf.mxu0
      %v714 = vpop.f32.mrf.mxu0
      %v715 = vadd.f32 %v358, %v714
      %v716 = vpop.f32.mrf.mxu0
      %717 = vmatprep.mubr.bf16.mxu0 0
      %718 = vmatmul.mubr.bf16.gmra.mxu0 %v555
      %v719 = vpop.f32.mrf.mxu0
      %v720 = vadd.f32 %v358, %v719
      %v721 = vpop.f32.mrf.mxu0
      %v722 = vpop.f32.mrf.mxu0
      %v723 = vadd.f32 %v358, %v722
      %v724 = vpop.f32.mrf.mxu0
      %725 = vmatprep.mubr.bf16.mxu0 0
      %726 = vmatmul.mubr.bf16.gmra.mxu0 %v558
      %v727 = vpop.f32.mrf.mxu0
      %v728 = vadd.f32 %v358, %v727
      %v729 = vpop.f32.mrf.mxu0
      %v730 = vpop.f32.mrf.mxu0
      %v731 = vadd.f32 %v358, %v730
      %v732 = vpop.f32.mrf.mxu0
      %733 = vmatprep.mubr.bf16.mxu0 0
      %734 = vmatmul.mubr.bf16.gmra.mxu0 %v561
      %v735 = vpop.f32.mrf.mxu0
      %v736 = vadd.f32 %v358, %v735
      %v737 = vpop.f32.mrf.mxu0
      %v738 = vpop.f32.mrf.mxu0
      %v739 = vadd.f32 %v358, %v738
      %v740 = vpop.f32.mrf.mxu0
      %741 = vmatprep.mubr.bf16.mxu0 0
      %742 = vmatmul.mubr.bf16.gmra.mxu0 %v564
      %v743 = vpop.f32.mrf.mxu0
      %v744 = vadd.f32 %v358, %v743
      %v745 = vpop.f32.mrf.mxu0
      %v746 = vpop.f32.mrf.mxu0
      %v747 = vadd.f32 %v358, %v746
      %v748 = vpop.f32.mrf.mxu0
      %749 = vmatprep.mubr.bf16.mxu0 0
      %750 = vmatmul.mubr.bf16.gmra.mxu0 %v567
      %v751 = vpop.f32.mrf.mxu0
      %v752 = vadd.f32 %v358, %v751
      %v753 = vpop.f32.mrf.mxu0
      %v754 = vpop.f32.mrf.mxu0
      %v755 = vadd.f32 %v358, %v754
      %v756 = vpop.f32.mrf.mxu0
      %757 = vmatprep.mubr.bf16.mxu0 0
      %758 = vmatmul.mubr.bf16.gmra.mxu0 %v570
      %v759 = vpop.f32.mrf.mxu0
      %v760 = vadd.f32 %v358, %v759
      %v761 = vpop.f32.mrf.mxu0
      %v762 = vpop.f32.mrf.mxu0
      %v763 = vadd.f32 %v358, %v762
      %v764 = vpop.f32.mrf.mxu0
      %765 = vmatprep.mubr.bf16.mxu0 0
      %766 = vmatmul.mubr.bf16.gmra.mxu0 %v573
      %v767 = vpop.f32.mrf.mxu0
      %v768 = vadd.f32 %v358, %v767
      %v769 = vpop.f32.mrf.mxu0
      %v770 = vpop.f32.mrf.mxu0
      %v771 = vadd.f32 %v358, %v770
      %v772 = vpop.f32.mrf.mxu0
      %773 = vmatprep.mubr.bf16.mxu0 0
      %774 = vmatmul.mubr.bf16.gmra.mxu0 %v576
      %v775 = vpop.f32.mrf.mxu0
      %v776 = vadd.f32 %v358, %v775
      %v777 = vpop.f32.mrf.mxu0
      %v778 = vpop.f32.mrf.mxu0
      %v779 = vadd.f32 %v358, %v778
      %v780 = vpop.f32.mrf.mxu0
      %781 = vmatprep.mubr.bf16.mxu0 0
      %782 = vmatmul.mubr.bf16.gmra.mxu0 %v579
      %v783 = vpop.f32.mrf.mxu0
      %v784 = vadd.f32 %v358, %v783
      %v785 = vpop.f32.mrf.mxu0
      %v786 = vpop.f32.mrf.mxu0
      %v787 = vadd.f32 %v358, %v786
      %v788 = vpop.f32.mrf.mxu0
      %789 = vmatprep.mubr.bf16.mxu0 0
      %790 = vmatmul.mubr.bf16.gmra.mxu0 %v582
      %v791 = vpop.f32.mrf.mxu0
      %v792 = vadd.f32 %v358, %v791
      %v793 = vpop.f32.mrf.mxu0
      %v794 = vpop.f32.mrf.mxu0
      %v795 = vadd.f32 %v358, %v794
      %v796 = vpop.f32.mrf.mxu0
      %797 = vmatprep.mubr.bf16.mxu0 0
      %798 = vmatmul.mubr.bf16.gmra.mxu0 %v585
      %v799 = vpop.f32.mrf.mxu0
      %v800 = vadd.f32 %v358, %v799
      %v801 = vpop.f32.mrf.mxu0
      %v802 = vpop.f32.mrf.mxu0
      %v803 = vadd.f32 %v358, %v802
      %v804 = vpop.f32.mrf.mxu0
      %805 = vmatprep.mubr.bf16.mxu0 0
      %806 = vmatmul.mubr.bf16.gmra.mxu0 %v588
      %v807 = vpop.f32.mrf.mxu0
      %v808 = vadd.f32 %v358, %v807
      %v809 = vpop.f32.mrf.mxu0
      %v810 = vpop.f32.mrf.mxu0
      %v811 = vadd.f32 %v358, %v810
      %v812 = vpop.f32.mrf.mxu0
      %813 = vmatprep.mubr.bf16.mxu0 0
      %814 = vmatmul.mubr.bf16.gmra.mxu0 %v591
      %v815 = vpop.f32.mrf.mxu0
      %v816 = vadd.f32 %v358, %v815
      %v817 = vpop.f32.mrf.mxu0
      %v818 = vpop.f32.mrf.mxu0
      %v819 = vadd.f32 %v358, %v818
      %v820 = vpop.f32.mrf.mxu0
      %821 = vmatprep.mubr.bf16.mxu0 0
      %822 = vmatmul.mubr.bf16.gmra.mxu0 %v594
      %v823 = vpop.f32.mrf.mxu0
      %v824 = vadd.f32 %v358, %v823
      %v825 = vpop.f32.mrf.mxu0
      %v826 = vpop.f32.mrf.mxu0
      %v827 = vadd.f32 %v358, %v826
      %v828 = vpop.f32.mrf.mxu0
      %829 = vmatprep.mubr.bf16.mxu0 0
      %830 = vmatmul.mubr.bf16.gmra.mxu0 %v597
      %v831 = vpop.f32.mrf.mxu0
      %v832 = vadd.f32 %v358, %v831
      %v833 = vpop.f32.mrf.mxu0
      %v834 = vpop.f32.mrf.mxu0
      %v835 = vadd.f32 %v358, %v834
      %v836 = vpop.f32.mrf.mxu0
      %837 = vmatprep.mubr.bf16.mxu0 0
      %838 = vmatmul.mubr.bf16.gmra.mxu0 %v600
      %v839 = vpop.f32.mrf.mxu0
      %v840 = vadd.f32 %v358, %v839
      %v841 = vpop.f32.mrf.mxu0
      %v842 = vpop.f32.mrf.mxu0
      %v843 = vadd.f32 %v358, %v842
      %v844 = vpop.f32.mrf.mxu0
      %845 = vmatprep.mubr.bf16.mxu0 0
      %846 = vmatmul.mubr.bf16.gmra.mxu0 %v603
      %v847 = vpop.f32.mrf.mxu0
      %v848 = vadd.f32 %v358, %v847
      %v849 = vpop.f32.mrf.mxu0
      %v850 = vpop.f32.mrf.mxu0
      %v851 = vadd.f32 %v358, %v850
      %v852 = vpop.f32.mrf.mxu0
      %853 = vmatprep.mubr.bf16.mxu0 0
      %854 = vmatmul.mubr.bf16.gmra.mxu0 %v606
      %v855 = vpop.f32.mrf.mxu0
      %v856 = vadd.f32 %v358, %v855
      %v857 = vpop.f32.mrf.mxu0
      %v858 = vpop.f32.mrf.mxu0
      %v859 = vadd.f32 %v358, %v858
      %v860 = vpop.f32.mrf.mxu0
      %861 = vmatprep.mubr.bf16.mxu0 0
      %862 = vmatmul.mubr.bf16.gmra.mxu0 %v609
      %v863 = vpop.f32.mrf.mxu0
      %v864 = vadd.f32 %v358, %v863
      %v865 = vpop.f32.mrf.mxu0
      %v866 = vpop.f32.mrf.mxu0
      %v867 = vadd.f32 %v358, %v866
      %v868 = vpop.f32.mrf.mxu0
      %869 = vmatprep.mubr.bf16.mxu0 0
      %870 = vmatmul.mubr.bf16.gmra.mxu0 %v612
      %v871 = vpop.f32.mrf.mxu0
      %v872 = vadd.f32 %v358, %v871
      %v873 = vpop.f32.mrf.mxu0
      %v874 = vpop.f32.mrf.mxu0
      %v875 = vadd.f32 %v358, %v874
      %v876 = vpop.f32.mrf.mxu0
      %877 = vmatprep.mubr.bf16.mxu0 0
      %878 = vmatmul.mubr.bf16.gmra.mxu0 %v615
      %v879 = vpop.f32.mrf.mxu0
      %v880 = vadd.f32 %v358, %v879
      %v881 = vpop.f32.mrf.mxu0
      %v882 = vpop.f32.mrf.mxu0
      %v883 = vadd.f32 %v358, %v882
      %v884 = vpop.f32.mrf.mxu0
      %885 = vmatprep.mubr.bf16.mxu0 0
      %886 = vmatmul.mubr.bf16.gmra.mxu0 %v618
      %v887 = vpop.f32.mrf.mxu0
      %v888 = vadd.f32 %v358, %v887
      %v889 = vpop.f32.mrf.mxu0
      %v890 = vpop.f32.mrf.mxu0
      %v891 = vadd.f32 %v358, %v890
      %v892 = vpop.f32.mrf.mxu0
      %893 = vmatprep.mubr.bf16.mxu0 0
      %894 = vmatmul.mubr.bf16.gmra.mxu0 %v621
      %v895 = vpop.f32.mrf.mxu0
      %v896 = vadd.f32 %v358, %v895
      %v897 = vpop.f32.mrf.mxu0
      %v898 = vpop.f32.mrf.mxu0
      %v899 = vadd.f32 %v358, %v898
      %v900 = vpop.f32.mrf.mxu0
      %901 = vmatprep.mubr.bf16.mxu0 0
      %902 = vmatmul.mubr.bf16.gmra.mxu0 %v624
      %v903 = vpop.f32.mrf.mxu0
      %v904 = vadd.f32 %v358, %v903
      %v905 = vpop.f32.mrf.mxu0
      %v906 = vpop.f32.mrf.mxu0
      %v907 = vadd.f32 %v358, %v906
      %v908 = vpop.f32.mrf.mxu0
      %909 = vmatprep.mubr.bf16.mxu0 0
      %910 = vmatmul.mubr.bf16.gmra.mxu0 %v627
      %v911 = vpop.f32.mrf.mxu0
      %v912 = vadd.f32 %v358, %v911
      %v913 = vpop.f32.mrf.mxu0
      %v914 = vpop.f32.mrf.mxu0
      %v915 = vadd.f32 %v358, %v914
      %v916 = vpop.f32.mrf.mxu0
      %917 = vdwg.mxu0
      %v918 = vmax.f32 %v664, 0.0
      %v919 = vmax.f32 %v667, 0.0
      %v920 = vmax.f32 %v672, 0.0
      %v921 = vmax.f32 %v675, 0.0
      %v922 = vmax.f32 %v680, 0.0
      %v923 = vmax.f32 %v683, 0.0
      %v924 = vmax.f32 %v688, 0.0
      %v925 = vmax.f32 %v691, 0.0
      %v926 = vmax.f32 %v696, 0.0
      %v927 = vmax.f32 %v699, 0.0
      %v928 = vmax.f32 %v704, 0.0
      %v929 = vmax.f32 %v707, 0.0
      %v930 = vmax.f32 %v712, 0.0
      %v931 = vmax.f32 %v715, 0.0
      %v932 = vmax.f32 %v720, 0.0
      %v933 = vmax.f32 %v723, 0.0
      %v934 = vmax.f32 %v728, 0.0
      %v935 = vmax.f32 %v731, 0.0
      %v936 = vmax.f32 %v736, 0.0
      %v937 = vmax.f32 %v739, 0.0
      %v938 = vmax.f32 %v744, 0.0
      %v939 = vmax.f32 %v747, 0.0
      %v940 = vmax.f32 %v752, 0.0
      %v941 = vmax.f32 %v755, 0.0
      %v942 = vmax.f32 %v760, 0.0
      %v943 = vmax.f32 %v763, 0.0
      %v944 = vmax.f32 %v768, 0.0
      %v945 = vmax.f32 %v771, 0.0
      %v946 = vmax.f32 %v776, 0.0
      %v947 = vmax.f32 %v779, 0.0
      %v948 = vmax.f32 %v784, 0.0
      %v949 = vmax.f32 %v787, 0.0
      %v950 = vmax.f32 %v792, 0.0
      %v951 = vmax.f32 %v795, 0.0
      %v952 = vmax.f32 %v800, 0.0
      %v953 = vmax.f32 %v803, 0.0
      %v954 = vmax.f32 %v808, 0.0
      %v955 = vmax.f32 %v811, 0.0
      %v956 = vmax.f32 %v816, 0.0
      %v957 = vmax.f32 %v819, 0.0
      %v958 = vmax.f32 %v824, 0.0
      %v959 = vmax.f32 %v827, 0.0
      %v960 = vmax.f32 %v832, 0.0
      %v961 = vmax.f32 %v835, 0.0
      %v962 = vmax.f32 %v840, 0.0
      %v963 = vmax.f32 %v843, 0.0
      %v964 = vmax.f32 %v848, 0.0
      %v965 = vmax.f32 %v851, 0.0
      %v966 = vmax.f32 %v856, 0.0
      %v967 = vmax.f32 %v859, 0.0
      %v968 = vmax.f32 %v864, 0.0
      %v969 = vmax.f32 %v867, 0.0
      %v970 = vmax.f32 %v872, 0.0
      %v971 = vmax.f32 %v875, 0.0
      %v972 = vmax.f32 %v880, 0.0
      %v973 = vmax.f32 %v883, 0.0
      %v974 = vmax.f32 %v888, 0.0
      %v975 = vmax.f32 %v891, 0.0
      %v976 = vmax.f32 %v896, 0.0
      %v977 = vmax.f32 %v899, 0.0
      %v978 = vmax.f32 %v904, 0.0
      %v979 = vmax.f32 %v907, 0.0
      %v980 = vmax.f32 %v912, 0.0
      %v981 = vmax.f32 %v915, 0.0
      %v982 = vpack.c.bf16 %v919, %v918
      %v983 = vpack.c.bf16 %v921, %v920
      %v984 = vpack.c.bf16 %v923, %v922
      %v985 = vpack.c.bf16 %v925, %v924
      %v986 = vpack.c.bf16 %v927, %v926
      %v987 = vpack.c.bf16 %v929, %v928
      %v988 = vpack.c.bf16 %v931, %v930
      %v989 = vpack.c.bf16 %v933, %v932
      %v990 = vpack.c.bf16 %v935, %v934
      %v991 = vpack.c.bf16 %v937, %v936
      %v992 = vpack.c.bf16 %v939, %v938
      %v993 = vpack.c.bf16 %v941, %v940
      %v994 = vpack.c.bf16 %v943, %v942
      %v995 = vpack.c.bf16 %v945, %v944
      %v996 = vpack.c.bf16 %v947, %v946
      %v997 = vpack.c.bf16 %v949, %v948
      %v998 = vpack.c.bf16 %v951, %v950
      %v999 = vpack.c.bf16 %v953, %v952
      %v1000 = vpack.c.bf16 %v955, %v954
      %v1001 = vpack.c.bf16 %v957, %v956
      %v1002 = vpack.c.bf16 %v959, %v958
      %v1003 = vpack.c.bf16 %v961, %v960
      %v1004 = vpack.c.bf16 %v963, %v962
      %v1005 = vpack.c.bf16 %v965, %v964
      %v1006 = vpack.c.bf16 %v967, %v966
      %v1007 = vpack.c.bf16 %v969, %v968
      %v1008 = vpack.c.bf16 %v971, %v970
      %v1009 = vpack.c.bf16 %v973, %v972
      %v1010 = vpack.c.bf16 %v975, %v974
      %v1011 = vpack.c.bf16 %v977, %v976
      %v1012 = vpack.c.bf16 %v979, %v978
      %v1013 = vpack.c.bf16 %v981, %v980
      %v1014 = vld [vmem:[%s3] sm:$0xf]
      %v1015 = vld [vmem:[%s3 + $0x4] sm:$0xf]
      %v1016 = vld [vmem:[%s3 + $0x8] sm:$0xf]
      %v1017 = vld [vmem:[%s3 + $0xc] sm:$0xf]
      %v1018 = vld [vmem:[%s3 + $0x10] sm:$0xf]
      %v1019 = vld [vmem:[%s3 + $0x14] sm:$0xf]
      %v1020 = vld [vmem:[%s3 + $0x18] sm:$0xf]
      %v1021 = vld [vmem:[%s3 + $0x1c] sm:$0xf]
      %v1022 = vld [vmem:[%s3 + $0x20] sm:$0xf]
      %v1023 = vld [vmem:[%s3 + $0x24] sm:$0xf]
      %v1024 = vld [vmem:[%s3 + $0x28] sm:$0xf]
      %v1025 = vld [vmem:[%s3 + $0x2c] sm:$0xf]
      %v1026 = vld [vmem:[%s3 + $0x30] sm:$0xf]
      %v1027 = vld [vmem:[%s3 + $0x34] sm:$0xf]
      %v1028 = vld [vmem:[%s3 + $0x38] sm:$0xf]
      %v1029 = vld [vmem:[%s3 + $0x3c] sm:$0xf]
      %v1030 = vld [vmem:[%s4] sm:$0x1]
      %v1032 = vlaneseq
      %v1033 = vshrl.u32 %v1032, 7
      %v1034 = vsub.s32 0, %v1033
      %v1035 = vrot.slane %v1030, %v1034
      %v1053 = vunpack.c.l.b16 %v1014
      %v1054 = vunpack.c.l.b16 %v1015
      %v1055 = vunpack.c.l.b16 %v1016
      %v1056 = vunpack.c.l.b16 %v1017
      %v1057 = vunpack.c.l.b16 %v1018
      %v1058 = vunpack.c.l.b16 %v1019
      %v1059 = vunpack.c.l.b16 %v1020
      %v1060 = vunpack.c.l.b16 %v1021
      %v1061 = vunpack.c.l.b16 %v1022
      %v1062 = vunpack.c.l.b16 %v1023
      %v1063 = vunpack.c.l.b16 %v1024
      %v1064 = vunpack.c.l.b16 %v1025
      %v1065 = vunpack.c.l.b16 %v1026
      %v1066 = vunpack.c.l.b16 %v1027
      %v1067 = vunpack.c.l.b16 %v1028
      %v1068 = vunpack.c.l.b16 %v1029
      %v1069 = vpack.c.b16 %v1054, %v1053
      %v1070 = vpack.c.b16 %v1056, %v1055
      %v1071 = vpack.c.b16 %v1058, %v1057
      %v1072 = vpack.c.b16 %v1060, %v1059
      %v1073 = vpack.c.b16 %v1062, %v1061
      %v1074 = vpack.c.b16 %v1064, %v1063
      %v1075 = vpack.c.b16 %v1066, %v1065
      %v1076 = vpack.c.b16 %v1068, %v1067
      %1085 = vmatprep.subr.bf16.mxu0 0
      %1086 = vmatpush1.bf16.msra.mxu0 %v1076
      %1087 = vmatprep.subr.bf16.mxu0 0
      %1088 = vmatpush1.bf16.msra.mxu0 %v1075
      %1089 = vmatprep.subr.bf16.mxu0 0
      %1090 = vmatpush1.bf16.msra.mxu0 %v1074
      %1091 = vmatprep.subr.bf16.mxu0 0
      %1092 = vmatpush1.bf16.msra.mxu0 %v1073
      %1093 = vmatprep.subr.bf16.mxu0 0
      %1094 = vmatpush1.bf16.msra.mxu0 %v1072
      %1095 = vmatprep.subr.bf16.mxu0 0
      %1096 = vmatpush1.bf16.msra.mxu0 %v1071
      %1097 = vmatprep.subr.bf16.mxu0 0
      %1098 = vmatpush1.bf16.msra.mxu0 %v1070
      %1099 = vmatprep.subr.bf16.mxu0 0
      %1100 = vmatpush1.bf16.msra.mxu0 %v1069
      %1101 = vmatprep.subr.bf16.mxu0 0
      %1102 = vmatpush2.bf16.msra.mxu0 0
      %1103 = vmatprep.subr.bf16.mxu0 0
      %1104 = vmatpush2.bf16.msra.mxu0 0
      %1105 = vmatprep.subr.bf16.mxu0 0
      %1106 = vmatpush2.bf16.msra.mxu0 0
      %1107 = vmatprep.subr.bf16.mxu0 0
      %1108 = vmatpush2.bf16.msra.mxu0 0
      %1109 = vmatprep.subr.bf16.mxu0 0
      %1110 = vmatpush2.bf16.msra.mxu0 0
      %1111 = vmatprep.subr.bf16.mxu0 0
      %1112 = vmatpush2.bf16.msra.mxu0 0
      %1113 = vmatprep.subr.bf16.mxu0 0
      %1114 = vmatpush2.bf16.msra.mxu0 0
      %1115 = vmatprep.subr.bf16.mxu0 0
      %1116 = vmatpush2.bf16.msra.mxu0 0
      %1117 = vmatprep.mubr.bf16.mxu0 0
      %1118 = vmatmul.mubr.bf16.gmra.mxu0 %v982
      %v1119 = vpop.f32.mrf.mxu0
      %v1120 = vadd.f32 %v1035, %v1119
      %v1121 = vpop.f32.mrf.mxu0
      %v1122 = vpop.f32.mrf.mxu0
      %v1123 = vadd.f32 %v1035, %v1122
      %v1124 = vpop.f32.mrf.mxu0
      %1125 = vmatprep.mubr.bf16.mxu0 0
      %1126 = vmatmul.mubr.bf16.gmra.mxu0 %v983
      %v1127 = vpop.f32.mrf.mxu0
      %v1128 = vadd.f32 %v1035, %v1127
      %v1129 = vpop.f32.mrf.mxu0
      %v1130 = vpop.f32.mrf.mxu0
      %v1131 = vadd.f32 %v1035, %v1130
      %v1132 = vpop.f32.mrf.mxu0
      %1133 = vmatprep.mubr.bf16.mxu0 0
      %1134 = vmatmul.mubr.bf16.gmra.mxu0 %v984
      %v1135 = vpop.f32.mrf.mxu0
      %v1136 = vadd.f32 %v1035, %v1135
      %v1137 = vpop.f32.mrf.mxu0
      %v1138 = vpop.f32.mrf.mxu0
      %v1139 = vadd.f32 %v1035, %v1138
      %v1140 = vpop.f32.mrf.mxu0
      %1141 = vmatprep.mubr.bf16.mxu0 0
      %1142 = vmatmul.mubr.bf16.gmra.mxu0 %v985
      %v1143 = vpop.f32.mrf.mxu0
      %v1144 = vadd.f32 %v1035, %v1143
      %v1145 = vpop.f32.mrf.mxu0
      %v1146 = vpop.f32.mrf.mxu0
      %v1147 = vadd.f32 %v1035, %v1146
      %v1148 = vpop.f32.mrf.mxu0
      %1149 = vmatprep.mubr.bf16.mxu0 0
      %1150 = vmatmul.mubr.bf16.gmra.mxu0 %v986
      %v1151 = vpop.f32.mrf.mxu0
      %v1152 = vadd.f32 %v1035, %v1151
      %v1153 = vpop.f32.mrf.mxu0
      %v1154 = vpop.f32.mrf.mxu0
      %v1155 = vadd.f32 %v1035, %v1154
      %v1156 = vpop.f32.mrf.mxu0
      %1157 = vmatprep.mubr.bf16.mxu0 0
      %1158 = vmatmul.mubr.bf16.gmra.mxu0 %v987
      %v1159 = vpop.f32.mrf.mxu0
      %v1160 = vadd.f32 %v1035, %v1159
      %v1161 = vpop.f32.mrf.mxu0
      %v1162 = vpop.f32.mrf.mxu0
      %v1163 = vadd.f32 %v1035, %v1162
      %v1164 = vpop.f32.mrf.mxu0
      %1165 = vmatprep.mubr.bf16.mxu0 0
      %1166 = vmatmul.mubr.bf16.gmra.mxu0 %v988
      %v1167 = vpop.f32.mrf.mxu0
      %v1168 = vadd.f32 %v1035, %v1167
      %v1169 = vpop.f32.mrf.mxu0
      %v1170 = vpop.f32.mrf.mxu0
      %v1171 = vadd.f32 %v1035, %v1170
      %v1172 = vpop.f32.mrf.mxu0
      %1173 = vmatprep.mubr.bf16.mxu0 0
      %1174 = vmatmul.mubr.bf16.gmra.mxu0 %v989
      %v1175 = vpop.f32.mrf.mxu0
      %v1176 = vadd.f32 %v1035, %v1175
      %v1177 = vpop.f32.mrf.mxu0
      %v1178 = vpop.f32.mrf.mxu0
      %v1179 = vadd.f32 %v1035, %v1178
      %v1180 = vpop.f32.mrf.mxu0
      %1181 = vmatprep.mubr.bf16.mxu0 0
      %1182 = vmatmul.mubr.bf16.gmra.mxu0 %v990
      %v1183 = vpop.f32.mrf.mxu0
      %v1184 = vadd.f32 %v1035, %v1183
      %v1185 = vpop.f32.mrf.mxu0
      %v1186 = vpop.f32.mrf.mxu0
      %v1187 = vadd.f32 %v1035, %v1186
      %v1188 = vpop.f32.mrf.mxu0
      %1189 = vmatprep.mubr.bf16.mxu0 0
      %1190 = vmatmul.mubr.bf16.gmra.mxu0 %v991
      %v1191 = vpop.f32.mrf.mxu0
      %v1192 = vadd.f32 %v1035, %v1191
      %v1193 = vpop.f32.mrf.mxu0
      %v1194 = vpop.f32.mrf.mxu0
      %v1195 = vadd.f32 %v1035, %v1194
      %v1196 = vpop.f32.mrf.mxu0
      %1197 = vmatprep.mubr.bf16.mxu0 0
      %1198 = vmatmul.mubr.bf16.gmra.mxu0 %v992
      %v1199 = vpop.f32.mrf.mxu0
      %v1200 = vadd.f32 %v1035, %v1199
      %v1201 = vpop.f32.mrf.mxu0
      %v1202 = vpop.f32.mrf.mxu0
      %v1203 = vadd.f32 %v1035, %v1202
      %v1204 = vpop.f32.mrf.mxu0
      %1205 = vmatprep.mubr.bf16.mxu0 0
      %1206 = vmatmul.mubr.bf16.gmra.mxu0 %v993
      %v1207 = vpop.f32.mrf.mxu0
      %v1208 = vadd.f32 %v1035, %v1207
      %v1209 = vpop.f32.mrf.mxu0
      %v1210 = vpop.f32.mrf.mxu0
      %v1211 = vadd.f32 %v1035, %v1210
      %v1212 = vpop.f32.mrf.mxu0
      %1213 = vmatprep.mubr.bf16.mxu0 0
      %1214 = vmatmul.mubr.bf16.gmra.mxu0 %v994
      %v1215 = vpop.f32.mrf.mxu0
      %v1216 = vadd.f32 %v1035, %v1215
      %v1217 = vpop.f32.mrf.mxu0
      %v1218 = vpop.f32.mrf.mxu0
      %v1219 = vadd.f32 %v1035, %v1218
      %v1220 = vpop.f32.mrf.mxu0
      %1221 = vmatprep.mubr.bf16.mxu0 0
      %1222 = vmatmul.mubr.bf16.gmra.mxu0 %v995
      %v1223 = vpop.f32.mrf.mxu0
      %v1224 = vadd.f32 %v1035, %v1223
      %v1225 = vpop.f32.mrf.mxu0
      %v1226 = vpop.f32.mrf.mxu0
      %v1227 = vadd.f32 %v1035, %v1226
      %v1228 = vpop.f32.mrf.mxu0
      %1229 = vmatprep.mubr.bf16.mxu0 0
      %1230 = vmatmul.mubr.bf16.gmra.mxu0 %v996
      %v1231 = vpop.f32.mrf.mxu0
      %v1232 = vadd.f32 %v1035, %v1231
      %v1233 = vpop.f32.mrf.mxu0
      %v1234 = vpop.f32.mrf.mxu0
      %v1235 = vadd.f32 %v1035, %v1234
      %v1236 = vpop.f32.mrf.mxu0
      %1237 = vmatprep.mubr.bf16.mxu0 0
      %1238 = vmatmul.mubr.bf16.gmra.mxu0 %v997
      %v1239 = vpop.f32.mrf.mxu0
      %v1240 = vadd.f32 %v1035, %v1239
      %v1241 = vpop.f32.mrf.mxu0
      %v1242 = vpop.f32.mrf.mxu0
      %v1243 = vadd.f32 %v1035, %v1242
      %v1244 = vpop.f32.mrf.mxu0
      %1245 = vmatprep.mubr.bf16.mxu0 0
      %1246 = vmatmul.mubr.bf16.gmra.mxu0 %v998
      %v1247 = vpop.f32.mrf.mxu0
      %v1248 = vadd.f32 %v1035, %v1247
      %v1249 = vpop.f32.mrf.mxu0
      %v1250 = vpop.f32.mrf.mxu0
      %v1251 = vadd.f32 %v1035, %v1250
      %v1252 = vpop.f32.mrf.mxu0
      %1253 = vmatprep.mubr.bf16.mxu0 0
      %1254 = vmatmul.mubr.bf16.gmra.mxu0 %v999
      %v1255 = vpop.f32.mrf.mxu0
      %v1256 = vadd.f32 %v1035, %v1255
      %v1257 = vpop.f32.mrf.mxu0
      %v1258 = vpop.f32.mrf.mxu0
      %v1259 = vadd.f32 %v1035, %v1258
      %v1260 = vpop.f32.mrf.mxu0
      %1261 = vmatprep.mubr.bf16.mxu0 0
      %1262 = vmatmul.mubr.bf16.gmra.mxu0 %v1000
      %v1263 = vpop.f32.mrf.mxu0
      %v1264 = vadd.f32 %v1035, %v1263
      %v1265 = vpop.f32.mrf.mxu0
      %v1266 = vpop.f32.mrf.mxu0
      %v1267 = vadd.f32 %v1035, %v1266
      %v1268 = vpop.f32.mrf.mxu0
      %1269 = vmatprep.mubr.bf16.mxu0 0
      %1270 = vmatmul.mubr.bf16.gmra.mxu0 %v1001
      %v1271 = vpop.f32.mrf.mxu0
      %v1272 = vadd.f32 %v1035, %v1271
      %v1273 = vpop.f32.mrf.mxu0
      %v1274 = vpop.f32.mrf.mxu0
      %v1275 = vadd.f32 %v1035, %v1274
      %v1276 = vpop.f32.mrf.mxu0
      %1277 = vmatprep.mubr.bf16.mxu0 0
      %1278 = vmatmul.mubr.bf16.gmra.mxu0 %v1002
      %v1279 = vpop.f32.mrf.mxu0
      %v1280 = vadd.f32 %v1035, %v1279
      %v1281 = vpop.f32.mrf.mxu0
      %v1282 = vpop.f32.mrf.mxu0
      %v1283 = vadd.f32 %v1035, %v1282
      %v1284 = vpop.f32.mrf.mxu0
      %1285 = vmatprep.mubr.bf16.mxu0 0
      %1286 = vmatmul.mubr.bf16.gmra.mxu0 %v1003
      %v1287 = vpop.f32.mrf.mxu0
      %v1288 = vadd.f32 %v1035, %v1287
      %v1289 = vpop.f32.mrf.mxu0
      %v1290 = vpop.f32.mrf.mxu0
      %v1291 = vadd.f32 %v1035, %v1290
      %v1292 = vpop.f32.mrf.mxu0
      %1293 = vmatprep.mubr.bf16.mxu0 0
      %1294 = vmatmul.mubr.bf16.gmra.mxu0 %v1004
      %v1295 = vpop.f32.mrf.mxu0
      %v1296 = vadd.f32 %v1035, %v1295
      %v1297 = vpop.f32.mrf.mxu0
      %v1298 = vpop.f32.mrf.mxu0
      %v1299 = vadd.f32 %v1035, %v1298
      %v1300 = vpop.f32.mrf.mxu0
      %1301 = vmatprep.mubr.bf16.mxu0 0
      %1302 = vmatmul.mubr.bf16.gmra.mxu0 %v1005
      %v1303 = vpop.f32.mrf.mxu0
      %v1304 = vadd.f32 %v1035, %v1303
      %v1305 = vpop.f32.mrf.mxu0
      %v1306 = vpop.f32.mrf.mxu0
      %v1307 = vadd.f32 %v1035, %v1306
      %v1308 = vpop.f32.mrf.mxu0
      %1309 = vmatprep.mubr.bf16.mxu0 0
      %1310 = vmatmul.mubr.bf16.gmra.mxu0 %v1006
      %v1311 = vpop.f32.mrf.mxu0
      %v1312 = vadd.f32 %v1035, %v1311
      %v1313 = vpop.f32.mrf.mxu0
      %v1314 = vpop.f32.mrf.mxu0
      %v1315 = vadd.f32 %v1035, %v1314
      %v1316 = vpop.f32.mrf.mxu0
      %1317 = vmatprep.mubr.bf16.mxu0 0
      %1318 = vmatmul.mubr.bf16.gmra.mxu0 %v1007
      %v1319 = vpop.f32.mrf.mxu0
      %v1320 = vadd.f32 %v1035, %v1319
      %v1321 = vpop.f32.mrf.mxu0
      %v1322 = vpop.f32.mrf.mxu0
      %v1323 = vadd.f32 %v1035, %v1322
      %v1324 = vpop.f32.mrf.mxu0
      %1325 = vmatprep.mubr.bf16.mxu0 0
      %1326 = vmatmul.mubr.bf16.gmra.mxu0 %v1008
      %v1327 = vpop.f32.mrf.mxu0
      %v1328 = vadd.f32 %v1035, %v1327
      %v1329 = vpop.f32.mrf.mxu0
      %v1330 = vpop.f32.mrf.mxu0
      %v1331 = vadd.f32 %v1035, %v1330
      %v1332 = vpop.f32.mrf.mxu0
      %1333 = vmatprep.mubr.bf16.mxu0 0
      %1334 = vmatmul.mubr.bf16.gmra.mxu0 %v1009
      %v1335 = vpop.f32.mrf.mxu0
      %v1336 = vadd.f32 %v1035, %v1335
      %v1337 = vpop.f32.mrf.mxu0
      %v1338 = vpop.f32.mrf.mxu0
      %v1339 = vadd.f32 %v1035, %v1338
      %v1340 = vpop.f32.mrf.mxu0
      %1341 = vmatprep.mubr.bf16.mxu0 0
      %1342 = vmatmul.mubr.bf16.gmra.mxu0 %v1010
      %v1343 = vpop.f32.mrf.mxu0
      %v1344 = vadd.f32 %v1035, %v1343
      %v1345 = vpop.f32.mrf.mxu0
      %v1346 = vpop.f32.mrf.mxu0
      %v1347 = vadd.f32 %v1035, %v1346
      %v1348 = vpop.f32.mrf.mxu0
      %1349 = vmatprep.mubr.bf16.mxu0 0
      %1350 = vmatmul.mubr.bf16.gmra.mxu0 %v1011
      %v1351 = vpop.f32.mrf.mxu0
      %v1352 = vadd.f32 %v1035, %v1351
      %v1353 = vpop.f32.mrf.mxu0
      %v1354 = vpop.f32.mrf.mxu0
      %v1355 = vadd.f32 %v1035, %v1354
      %v1356 = vpop.f32.mrf.mxu0
      %1357 = vmatprep.mubr.bf16.mxu0 0
      %1358 = vmatmul.mubr.bf16.gmra.mxu0 %v1012
      %v1359 = vpop.f32.mrf.mxu0
      %v1360 = vadd.f32 %v1035, %v1359
      %v1361 = vpop.f32.mrf.mxu0
      %v1362 = vpop.f32.mrf.mxu0
      %v1363 = vadd.f32 %v1035, %v1362
      %v1364 = vpop.f32.mrf.mxu0
      %1365 = vmatprep.mubr.bf16.mxu0 0
      %1366 = vmatmul.mubr.bf16.gmra.mxu0 %v1013
      %v1367 = vpop.f32.mrf.mxu0
      %v1368 = vadd.f32 %v1035, %v1367
      %v1369 = vpop.f32.mrf.mxu0
      %v1370 = vpop.f32.mrf.mxu0
      %v1371 = vadd.f32 %v1035, %v1370
      %v1372 = vpop.f32.mrf.mxu0
      %1373 = vdwg.mxu0
      %v1374 = vmax.f32 %v1120, 0.0
      %v1375 = vmax.f32 %v1123, 0.0
      %v1376 = vmax.f32 %v1128, 0.0
      %v1377 = vmax.f32 %v1131, 0.0
      %v1378 = vmax.f32 %v1136, 0.0
      %v1379 = vmax.f32 %v1139, 0.0
      %v1380 = vmax.f32 %v1144, 0.0
      %v1381 = vmax.f32 %v1147, 0.0
      %v1382 = vmax.f32 %v1152, 0.0
      %v1383 = vmax.f32 %v1155, 0.0
      %v1384 = vmax.f32 %v1160, 0.0
      %v1385 = vmax.f32 %v1163, 0.0
      %v1386 = vmax.f32 %v1168, 0.0
      %v1387 = vmax.f32 %v1171, 0.0
      %v1388 = vmax.f32 %v1176, 0.0
      %v1389 = vmax.f32 %v1179, 0.0
      %v1390 = vmax.f32 %v1184, 0.0
      %v1391 = vmax.f32 %v1187, 0.0
      %v1392 = vmax.f32 %v1192, 0.0
      %v1393 = vmax.f32 %v1195, 0.0
      %v1394 = vmax.f32 %v1200, 0.0
      %v1395 = vmax.f32 %v1203, 0.0
      %v1396 = vmax.f32 %v1208, 0.0
      %v1397 = vmax.f32 %v1211, 0.0
      %v1398 = vmax.f32 %v1216, 0.0
      %v1399 = vmax.f32 %v1219, 0.0
      %v1400 = vmax.f32 %v1224, 0.0
      %v1401 = vmax.f32 %v1227, 0.0
      %v1402 = vmax.f32 %v1232, 0.0
      %v1403 = vmax.f32 %v1235, 0.0
      %v1404 = vmax.f32 %v1240, 0.0
      %v1405 = vmax.f32 %v1243, 0.0
      %v1406 = vmax.f32 %v1248, 0.0
      %v1407 = vmax.f32 %v1251, 0.0
      %v1408 = vmax.f32 %v1256, 0.0
      %v1409 = vmax.f32 %v1259, 0.0
      %v1410 = vmax.f32 %v1264, 0.0
      %v1411 = vmax.f32 %v1267, 0.0
      %v1412 = vmax.f32 %v1272, 0.0
      %v1413 = vmax.f32 %v1275, 0.0
      %v1414 = vmax.f32 %v1280, 0.0
      %v1415 = vmax.f32 %v1283, 0.0
      %v1416 = vmax.f32 %v1288, 0.0
      %v1417 = vmax.f32 %v1291, 0.0
      %v1418 = vmax.f32 %v1296, 0.0
      %v1419 = vmax.f32 %v1299, 0.0
      %v1420 = vmax.f32 %v1304, 0.0
      %v1421 = vmax.f32 %v1307, 0.0
      %v1422 = vmax.f32 %v1312, 0.0
      %v1423 = vmax.f32 %v1315, 0.0
      %v1424 = vmax.f32 %v1320, 0.0
      %v1425 = vmax.f32 %v1323, 0.0
      %v1426 = vmax.f32 %v1328, 0.0
      %v1427 = vmax.f32 %v1331, 0.0
      %v1428 = vmax.f32 %v1336, 0.0
      %v1429 = vmax.f32 %v1339, 0.0
      %v1430 = vmax.f32 %v1344, 0.0
      %v1431 = vmax.f32 %v1347, 0.0
      %v1432 = vmax.f32 %v1352, 0.0
      %v1433 = vmax.f32 %v1355, 0.0
      %v1434 = vmax.f32 %v1360, 0.0
      %v1435 = vmax.f32 %v1363, 0.0
      %v1436 = vmax.f32 %v1368, 0.0
      %v1437 = vmax.f32 %v1371, 0.0
      %v1438 = vld [vmem:[%s5] sm:$0x1]
      %v1440 = vlaneseq
      %v1441 = vshrl.u32 %v1440, 7
      %v1442 = vsub.s32 0, %v1441
      %v1443 = vrot.slane %v1438, %v1442
      %v1445 = vmul.f32 %v1374, %v1443
      %v1446 = vmul.f32 %v1375, %v1443
      %v1447 = vmul.f32 %v1376, %v1443
      %v1448 = vmul.f32 %v1377, %v1443
      %v1449 = vmul.f32 %v1378, %v1443
      %v1450 = vmul.f32 %v1379, %v1443
      %v1451 = vmul.f32 %v1380, %v1443
      %v1452 = vmul.f32 %v1381, %v1443
      %v1453 = vmul.f32 %v1382, %v1443
      %v1454 = vmul.f32 %v1383, %v1443
      %v1455 = vmul.f32 %v1384, %v1443
      %v1456 = vmul.f32 %v1385, %v1443
      %v1457 = vmul.f32 %v1386, %v1443
      %v1458 = vmul.f32 %v1387, %v1443
      %v1459 = vmul.f32 %v1388, %v1443
      %v1460 = vmul.f32 %v1389, %v1443
      %v1461 = vmul.f32 %v1390, %v1443
      %v1462 = vmul.f32 %v1391, %v1443
      %v1463 = vmul.f32 %v1392, %v1443
      %v1464 = vmul.f32 %v1393, %v1443
      %v1465 = vmul.f32 %v1394, %v1443
      %v1466 = vmul.f32 %v1395, %v1443
      %v1467 = vmul.f32 %v1396, %v1443
      %v1468 = vmul.f32 %v1397, %v1443
      %v1469 = vmul.f32 %v1398, %v1443
      %v1470 = vmul.f32 %v1399, %v1443
      %v1471 = vmul.f32 %v1400, %v1443
      %v1472 = vmul.f32 %v1401, %v1443
      %v1473 = vmul.f32 %v1402, %v1443
      %v1474 = vmul.f32 %v1403, %v1443
      %v1475 = vmul.f32 %v1404, %v1443
      %v1476 = vmul.f32 %v1405, %v1443
      %v1477 = vmul.f32 %v1406, %v1443
      %v1478 = vmul.f32 %v1407, %v1443
      %v1479 = vmul.f32 %v1408, %v1443
      %v1480 = vmul.f32 %v1409, %v1443
      %v1481 = vmul.f32 %v1410, %v1443
      %v1482 = vmul.f32 %v1411, %v1443
      %v1483 = vmul.f32 %v1412, %v1443
      %v1484 = vmul.f32 %v1413, %v1443
      %v1485 = vmul.f32 %v1414, %v1443
      %v1486 = vmul.f32 %v1415, %v1443
      %v1487 = vmul.f32 %v1416, %v1443
      %v1488 = vmul.f32 %v1417, %v1443
      %v1489 = vmul.f32 %v1418, %v1443
      %v1490 = vmul.f32 %v1419, %v1443
      %v1491 = vmul.f32 %v1420, %v1443
      %v1492 = vmul.f32 %v1421, %v1443
      %v1493 = vmul.f32 %v1422, %v1443
      %v1494 = vmul.f32 %v1423, %v1443
      %v1495 = vmul.f32 %v1424, %v1443
      %v1496 = vmul.f32 %v1425, %v1443
      %v1497 = vmul.f32 %v1426, %v1443
      %v1498 = vmul.f32 %v1427, %v1443
      %v1499 = vmul.f32 %v1428, %v1443
      %v1500 = vmul.f32 %v1429, %v1443
      %v1501 = vmul.f32 %v1430, %v1443
      %v1502 = vmul.f32 %v1431, %v1443
      %v1503 = vmul.f32 %v1432, %v1443
      %v1504 = vmul.f32 %v1433, %v1443
      %v1505 = vmul.f32 %v1434, %v1443
      %v1506 = vmul.f32 %v1435, %v1443
      %v1507 = vmul.f32 %v1436, %v1443
      %v1508 = vmul.f32 %v1437, %v1443
      %1509 = vadd.xlane.f32.xlu0 %v1445
      %v1510 = vpop.xlane.xlu0 %1509
      %1511 = vadd.xlane.f32.xlu0 %v1446
      %v1512 = vpop.xlane.xlu0 %1511
      %1513 = vadd.xlane.f32.xlu0 %v1447
      %v1514 = vpop.xlane.xlu0 %1513
      %1515 = vadd.xlane.f32.xlu0 %v1448
      %v1516 = vpop.xlane.xlu0 %1515
      %1517 = vadd.xlane.f32.xlu0 %v1449
      %v1518 = vpop.xlane.xlu0 %1517
      %1519 = vadd.xlane.f32.xlu0 %v1450
      %v1520 = vpop.xlane.xlu0 %1519
      %1521 = vadd.xlane.f32.xlu0 %v1451
      %v1522 = vpop.xlane.xlu0 %1521
      %1523 = vadd.xlane.f32.xlu0 %v1452
      %v1524 = vpop.xlane.xlu0 %1523
      %1525 = vadd.xlane.f32.xlu0 %v1453
      %v1526 = vpop.xlane.xlu0 %1525
      %1527 = vadd.xlane.f32.xlu0 %v1454
      %v1528 = vpop.xlane.xlu0 %1527
      %1529 = vadd.xlane.f32.xlu0 %v1455
      %v1530 = vpop.xlane.xlu0 %1529
      %1531 = vadd.xlane.f32.xlu0 %v1456
      %v1532 = vpop.xlane.xlu0 %1531
      %1533 = vadd.xlane.f32.xlu0 %v1457
      %v1534 = vpop.xlane.xlu0 %1533
      %1535 = vadd.xlane.f32.xlu0 %v1458
      %v1536 = vpop.xlane.xlu0 %1535
      %1537 = vadd.xlane.f32.xlu0 %v1459
      %v1538 = vpop.xlane.xlu0 %1537
      %1539 = vadd.xlane.f32.xlu0 %v1460
      %v1540 = vpop.xlane.xlu0 %1539
      %1541 = vadd.xlane.f32.xlu0 %v1461
      %v1542 = vpop.xlane.xlu0 %1541
      %1543 = vadd.xlane.f32.xlu0 %v1462
      %v1544 = vpop.xlane.xlu0 %1543
      %1545 = vadd.xlane.f32.xlu0 %v1463
      %v1546 = vpop.xlane.xlu0 %1545
      %1547 = vadd.xlane.f32.xlu0 %v1464
      %v1548 = vpop.xlane.xlu0 %1547
      %1549 = vadd.xlane.f32.xlu0 %v1465
      %v1550 = vpop.xlane.xlu0 %1549
      %1551 = vadd.xlane.f32.xlu0 %v1466
      %v1552 = vpop.xlane.xlu0 %1551
      %1553 = vadd.xlane.f32.xlu0 %v1467
      %v1554 = vpop.xlane.xlu0 %1553
      %1555 = vadd.xlane.f32.xlu0 %v1468
      %v1556 = vpop.xlane.xlu0 %1555
      %1557 = vadd.xlane.f32.xlu0 %v1469
      %v1558 = vpop.xlane.xlu0 %1557
      %1559 = vadd.xlane.f32.xlu0 %v1470
      %v1560 = vpop.xlane.xlu0 %1559
      %1561 = vadd.xlane.f32.xlu0 %v1471
      %v1562 = vpop.xlane.xlu0 %1561
      %1563 = vadd.xlane.f32.xlu0 %v1472
      %v1564 = vpop.xlane.xlu0 %1563
      %1565 = vadd.xlane.f32.xlu0 %v1473
      %v1566 = vpop.xlane.xlu0 %1565
      %1567 = vadd.xlane.f32.xlu0 %v1474
      %v1568 = vpop.xlane.xlu0 %1567
      %1569 = vadd.xlane.f32.xlu0 %v1475
      %v1570 = vpop.xlane.xlu0 %1569
      %1571 = vadd.xlane.f32.xlu0 %v1476
      %v1572 = vpop.xlane.xlu0 %1571
      %1573 = vadd.xlane.f32.xlu0 %v1477
      %v1574 = vpop.xlane.xlu0 %1573
      %1575 = vadd.xlane.f32.xlu0 %v1478
      %v1576 = vpop.xlane.xlu0 %1575
      %1577 = vadd.xlane.f32.xlu0 %v1479
      %v1578 = vpop.xlane.xlu0 %1577
      %1579 = vadd.xlane.f32.xlu0 %v1480
      %v1580 = vpop.xlane.xlu0 %1579
      %1581 = vadd.xlane.f32.xlu0 %v1481
      %v1582 = vpop.xlane.xlu0 %1581
      %1583 = vadd.xlane.f32.xlu0 %v1482
      %v1584 = vpop.xlane.xlu0 %1583
      %1585 = vadd.xlane.f32.xlu0 %v1483
      %v1586 = vpop.xlane.xlu0 %1585
      %1587 = vadd.xlane.f32.xlu0 %v1484
      %v1588 = vpop.xlane.xlu0 %1587
      %1589 = vadd.xlane.f32.xlu0 %v1485
      %v1590 = vpop.xlane.xlu0 %1589
      %1591 = vadd.xlane.f32.xlu0 %v1486
      %v1592 = vpop.xlane.xlu0 %1591
      %1593 = vadd.xlane.f32.xlu0 %v1487
      %v1594 = vpop.xlane.xlu0 %1593
      %1595 = vadd.xlane.f32.xlu0 %v1488
      %v1596 = vpop.xlane.xlu0 %1595
      %1597 = vadd.xlane.f32.xlu0 %v1489
      %v1598 = vpop.xlane.xlu0 %1597
      %1599 = vadd.xlane.f32.xlu0 %v1490
      %v1600 = vpop.xlane.xlu0 %1599
      %1601 = vadd.xlane.f32.xlu0 %v1491
      %v1602 = vpop.xlane.xlu0 %1601
      %1603 = vadd.xlane.f32.xlu0 %v1492
      %v1604 = vpop.xlane.xlu0 %1603
      %1605 = vadd.xlane.f32.xlu0 %v1493
      %v1606 = vpop.xlane.xlu0 %1605
      %1607 = vadd.xlane.f32.xlu0 %v1494
      %v1608 = vpop.xlane.xlu0 %1607
      %1609 = vadd.xlane.f32.xlu0 %v1495
      %v1610 = vpop.xlane.xlu0 %1609
      %1611 = vadd.xlane.f32.xlu0 %v1496
      %v1612 = vpop.xlane.xlu0 %1611
      %1613 = vadd.xlane.f32.xlu0 %v1497
      %v1614 = vpop.xlane.xlu0 %1613
      %1615 = vadd.xlane.f32.xlu0 %v1498
      %v1616 = vpop.xlane.xlu0 %1615
      %1617 = vadd.xlane.f32.xlu0 %v1499
      %v1618 = vpop.xlane.xlu0 %1617
      %1619 = vadd.xlane.f32.xlu0 %v1500
      %v1620 = vpop.xlane.xlu0 %1619
      %1621 = vadd.xlane.f32.xlu0 %v1501
      %v1622 = vpop.xlane.xlu0 %1621
      %1623 = vadd.xlane.f32.xlu0 %v1502
      %v1624 = vpop.xlane.xlu0 %1623
      %1625 = vadd.xlane.f32.xlu0 %v1503
      %v1626 = vpop.xlane.xlu0 %1625
      %1627 = vadd.xlane.f32.xlu0 %v1504
      %v1628 = vpop.xlane.xlu0 %1627
      %1629 = vadd.xlane.f32.xlu0 %v1505
      %v1630 = vpop.xlane.xlu0 %1629
      %1631 = vadd.xlane.f32.xlu0 %v1506
      %v1632 = vpop.xlane.xlu0 %1631
      %1633 = vadd.xlane.f32.xlu0 %v1507
      %v1634 = vpop.xlane.xlu0 %1633
      %1635 = vadd.xlane.f32.xlu0 %v1508
      %v1636 = vpop.xlane.xlu0 %1635
      %v1637 = vld [vmem:[#allocation2] sm:$0x1]
      %v1639 = vlaneseq
      %v1640 = vshrl.u32 %v1639, 7
      %v1641 = vsub.s32 0, %v1640
      %v1642 = vrot.slane %v1637, %v1641
      %v1644 = vadd.f32 %v1510, %v1642
      %v1645 = vadd.f32 %v1512, %v1642
      %v1646 = vadd.f32 %v1514, %v1642
      %v1647 = vadd.f32 %v1516, %v1642
      %v1648 = vadd.f32 %v1518, %v1642
      %v1649 = vadd.f32 %v1520, %v1642
      %v1650 = vadd.f32 %v1522, %v1642
      %v1651 = vadd.f32 %v1524, %v1642
      %v1652 = vadd.f32 %v1526, %v1642
      %v1653 = vadd.f32 %v1528, %v1642
      %v1654 = vadd.f32 %v1530, %v1642
      %v1655 = vadd.f32 %v1532, %v1642
      %v1656 = vadd.f32 %v1534, %v1642
      %v1657 = vadd.f32 %v1536, %v1642
      %v1658 = vadd.f32 %v1538, %v1642
      %v1659 = vadd.f32 %v1540, %v1642
      %v1660 = vadd.f32 %v1542, %v1642
      %v1661 = vadd.f32 %v1544, %v1642
      %v1662 = vadd.f32 %v1546, %v1642
      %v1663 = vadd.f32 %v1548, %v1642
      %v1664 = vadd.f32 %v1550, %v1642
      %v1665 = vadd.f32 %v1552, %v1642
      %v1666 = vadd.f32 %v1554, %v1642
      %v1667 = vadd.f32 %v1556, %v1642
      %v1668 = vadd.f32 %v1558, %v1642
      %v1669 = vadd.f32 %v1560, %v1642
      %v1670 = vadd.f32 %v1562, %v1642
      %v1671 = vadd.f32 %v1564, %v1642
      %v1672 = vadd.f32 %v1566, %v1642
      %v1673 = vadd.f32 %v1568, %v1642
      %v1674 = vadd.f32 %v1570, %v1642
      %v1675 = vadd.f32 %v1572, %v1642
      %v1676 = vadd.f32 %v1574, %v1642
      %v1677 = vadd.f32 %v1576, %v1642
      %v1678 = vadd.f32 %v1578, %v1642
      %v1679 = vadd.f32 %v1580, %v1642
      %v1680 = vadd.f32 %v1582, %v1642
      %v1681 = vadd.f32 %v1584, %v1642
      %v1682 = vadd.f32 %v1586, %v1642
      %v1683 = vadd.f32 %v1588, %v1642
      %v1684 = vadd.f32 %v1590, %v1642
      %v1685 = vadd.f32 %v1592, %v1642
      %v1686 = vadd.f32 %v1594, %v1642
      %v1687 = vadd.f32 %v1596, %v1642
      %v1688 = vadd.f32 %v1598, %v1642
      %v1689 = vadd.f32 %v1600, %v1642
      %v1690 = vadd.f32 %v1602, %v1642
      %v1691 = vadd.f32 %v1604, %v1642
      %v1692 = vadd.f32 %v1606, %v1642
      %v1693 = vadd.f32 %v1608, %v1642
      %v1694 = vadd.f32 %v1610, %v1642
      %v1695 = vadd.f32 %v1612, %v1642
      %v1696 = vadd.f32 %v1614, %v1642
      %v1697 = vadd.f32 %v1616, %v1642
      %v1698 = vadd.f32 %v1618, %v1642
      %v1699 = vadd.f32 %v1620, %v1642
      %v1700 = vadd.f32 %v1622, %v1642
      %v1701 = vadd.f32 %v1624, %v1642
      %v1702 = vadd.f32 %v1626, %v1642
      %v1703 = vadd.f32 %v1628, %v1642
      %v1704 = vadd.f32 %v1630, %v1642
      %v1705 = vadd.f32 %v1632, %v1642
      %v1706 = vadd.f32 %v1634, %v1642
      %v1707 = vadd.f32 %v1636, %v1642
      %v1708 = vsub.f32 0.0, %v1644
      %v1709 = vsub.f32 0.0, %v1645
      %v1710 = vsub.f32 0.0, %v1646
      %v1711 = vsub.f32 0.0, %v1647
      %v1712 = vsub.f32 0.0, %v1648
      %v1713 = vsub.f32 0.0, %v1649
      %v1714 = vsub.f32 0.0, %v1650
      %v1715 = vsub.f32 0.0, %v1651
      %v1716 = vsub.f32 0.0, %v1652
      %v1717 = vsub.f32 0.0, %v1653
      %v1718 = vsub.f32 0.0, %v1654
      %v1719 = vsub.f32 0.0, %v1655
      %v1720 = vsub.f32 0.0, %v1656
      %v1721 = vsub.f32 0.0, %v1657
      %v1722 = vsub.f32 0.0, %v1658
      %v1723 = vsub.f32 0.0, %v1659
      %v1724 = vsub.f32 0.0, %v1660
      %v1725 = vsub.f32 0.0, %v1661
      %v1726 = vsub.f32 0.0, %v1662
      %v1727 = vsub.f32 0.0, %v1663
      %v1728 = vsub.f32 0.0, %v1664
      %v1729 = vsub.f32 0.0, %v1665
      %v1730 = vsub.f32 0.0, %v1666
      %v1731 = vsub.f32 0.0, %v1667
      %v1732 = vsub.f32 0.0, %v1668
      %v1733 = vsub.f32 0.0, %v1669
      %v1734 = vsub.f32 0.0, %v1670
      %v1735 = vsub.f32 0.0, %v1671
      %v1736 = vsub.f32 0.0, %v1672
      %v1737 = vsub.f32 0.0, %v1673
      %v1738 = vsub.f32 0.0, %v1674
      %v1739 = vsub.f32 0.0, %v1675
      %v1740 = vsub.f32 0.0, %v1676
      %v1741 = vsub.f32 0.0, %v1677
      %v1742 = vsub.f32 0.0, %v1678
      %v1743 = vsub.f32 0.0, %v1679
      %v1744 = vsub.f32 0.0, %v1680
      %v1745 = vsub.f32 0.0, %v1681
      %v1746 = vsub.f32 0.0, %v1682
      %v1747 = vsub.f32 0.0, %v1683
      %v1748 = vsub.f32 0.0, %v1684
      %v1749 = vsub.f32 0.0, %v1685
      %v1750 = vsub.f32 0.0, %v1686
      %v1751 = vsub.f32 0.0, %v1687
      %v1752 = vsub.f32 0.0, %v1688
      %v1753 = vsub.f32 0.0, %v1689
      %v1754 = vsub.f32 0.0, %v1690
      %v1755 = vsub.f32 0.0, %v1691
      %v1756 = vsub.f32 0.0, %v1692
      %v1757 = vsub.f32 0.0, %v1693
      %v1758 = vsub.f32 0.0, %v1694
      %v1759 = vsub.f32 0.0, %v1695
      %v1760 = vsub.f32 0.0, %v1696
      %v1761 = vsub.f32 0.0, %v1697
      %v1762 = vsub.f32 0.0, %v1698
      %v1763 = vsub.f32 0.0, %v1699
      %v1764 = vsub.f32 0.0, %v1700
      %v1765 = vsub.f32 0.0, %v1701
      %v1766 = vsub.f32 0.0, %v1702
      %v1767 = vsub.f32 0.0, %v1703
      %v1768 = vsub.f32 0.0, %v1704
      %v1769 = vsub.f32 0.0, %v1705
      %v1770 = vsub.f32 0.0, %v1706
      %v1771 = vsub.f32 0.0, %v1707
      %v1772 = vmul.f32 %v1708, 1.442695
      %v1773 = vpow.pop %v1772
      %v1774 = vmul.f32 %v1709, 1.442695
      %v1775 = vpow.pop %v1774
      %v1776 = vmul.f32 %v1710, 1.442695
      %v1777 = vpow.pop %v1776
      %v1778 = vmul.f32 %v1711, 1.442695
      %v1779 = vpow.pop %v1778
      %v1780 = vmul.f32 %v1712, 1.442695
      %v1781 = vpow.pop %v1780
      %v1782 = vmul.f32 %v1713, 1.442695
      %v1783 = vpow.pop %v1782
      %v1784 = vmul.f32 %v1714, 1.442695
      %v1785 = vpow.pop %v1784
      %v1786 = vmul.f32 %v1715, 1.442695
      %v1787 = vpow.pop %v1786
      %v1788 = vmul.f32 %v1716, 1.442695
      %v1789 = vpow.pop %v1788
      %v1790 = vmul.f32 %v1717, 1.442695
      %v1791 = vpow.pop %v1790
      %v1792 = vmul.f32 %v1718, 1.442695
      %v1793 = vpow.pop %v1792
      %v1794 = vmul.f32 %v1719, 1.442695
      %v1795 = vpow.pop %v1794
      %v1796 = vmul.f32 %v1720, 1.442695
      %v1797 = vpow.pop %v1796
      %v1798 = vmul.f32 %v1721, 1.442695
      %v1799 = vpow.pop %v1798
      %v1800 = vmul.f32 %v1722, 1.442695
      %v1801 = vpow.pop %v1800
      %v1802 = vmul.f32 %v1723, 1.442695
      %v1803 = vpow.pop %v1802
      %v1804 = vmul.f32 %v1724, 1.442695
      %v1805 = vpow.pop %v1804
      %v1806 = vmul.f32 %v1725, 1.442695
      %v1807 = vpow.pop %v1806
      %v1808 = vmul.f32 %v1726, 1.442695
      %v1809 = vpow.pop %v1808
      %v1810 = vmul.f32 %v1727, 1.442695
      %v1811 = vpow.pop %v1810
      %v1812 = vmul.f32 %v1728, 1.442695
      %v1813 = vpow.pop %v1812
      %v1814 = vmul.f32 %v1729, 1.442695
      %v1815 = vpow.pop %v1814
      %v1816 = vmul.f32 %v1730, 1.442695
      %v1817 = vpow.pop %v1816
      %v1818 = vmul.f32 %v1731, 1.442695
      %v1819 = vpow.pop %v1818
      %v1820 = vmul.f32 %v1732, 1.442695
      %v1821 = vpow.pop %v1820
      %v1822 = vmul.f32 %v1733, 1.442695
      %v1823 = vpow.pop %v1822
      %v1824 = vmul.f32 %v1734, 1.442695
      %v1825 = vpow.pop %v1824
      %v1826 = vmul.f32 %v1735, 1.442695
      %v1827 = vpow.pop %v1826
      %v1828 = vmul.f32 %v1736, 1.442695
      %v1829 = vpow.pop %v1828
      %v1830 = vmul.f32 %v1737, 1.442695
      %v1831 = vpow.pop %v1830
      %v1832 = vmul.f32 %v1738, 1.442695
      %v1833 = vpow.pop %v1832
      %v1834 = vmul.f32 %v1739, 1.442695
      %v1835 = vpow.pop %v1834
      %v1836 = vmul.f32 %v1740, 1.442695
      %v1837 = vpow.pop %v1836
      %v1838 = vmul.f32 %v1741, 1.442695
      %v1839 = vpow.pop %v1838
      %v1840 = vmul.f32 %v1742, 1.442695
      %v1841 = vpow.pop %v1840
      %v1842 = vmul.f32 %v1743, 1.442695
      %v1843 = vpow.pop %v1842
      %v1844 = vmul.f32 %v1744, 1.442695
      %v1845 = vpow.pop %v1844
      %v1846 = vmul.f32 %v1745, 1.442695
      %v1847 = vpow.pop %v1846
      %v1848 = vmul.f32 %v1746, 1.442695
      %v1849 = vpow.pop %v1848
      %v1850 = vmul.f32 %v1747, 1.442695
      %v1851 = vpow.pop %v1850
      %v1852 = vmul.f32 %v1748, 1.442695
      %v1853 = vpow.pop %v1852
      %v1854 = vmul.f32 %v1749, 1.442695
      %v1855 = vpow.pop %v1854
      %v1856 = vmul.f32 %v1750, 1.442695
      %v1857 = vpow.pop %v1856
      %v1858 = vmul.f32 %v1751, 1.442695
      %v1859 = vpow.pop %v1858
      %v1860 = vmul.f32 %v1752, 1.442695
      %v1861 = vpow.pop %v1860
      %v1862 = vmul.f32 %v1753, 1.442695
      %v1863 = vpow.pop %v1862
      %v1864 = vmul.f32 %v1754, 1.442695
      %v1865 = vpow.pop %v1864
      %v1866 = vmul.f32 %v1755, 1.442695
      %v1867 = vpow.pop %v1866
      %v1868 = vmul.f32 %v1756, 1.442695
      %v1869 = vpow.pop %v1868
      %v1870 = vmul.f32 %v1757, 1.442695
      %v1871 = vpow.pop %v1870
      %v1872 = vmul.f32 %v1758, 1.442695
      %v1873 = vpow.pop %v1872
      %v1874 = vmul.f32 %v1759, 1.442695
      %v1875 = vpow.pop %v1874
      %v1876 = vmul.f32 %v1760, 1.442695
      %v1877 = vpow.pop %v1876
      %v1878 = vmul.f32 %v1761, 1.442695
      %v1879 = vpow.pop %v1878
      %v1880 = vmul.f32 %v1762, 1.442695
      %v1881 = vpow.pop %v1880
      %v1882 = vmul.f32 %v1763, 1.442695
      %v1883 = vpow.pop %v1882
      %v1884 = vmul.f32 %v1764, 1.442695
      %v1885 = vpow.pop %v1884
      %v1886 = vmul.f32 %v1765, 1.442695
      %v1887 = vpow.pop %v1886
      %v1888 = vmul.f32 %v1766, 1.442695
      %v1889 = vpow.pop %v1888
      %v1890 = vmul.f32 %v1767, 1.442695
      %v1891 = vpow.pop %v1890
      %v1892 = vmul.f32 %v1768, 1.442695
      %v1893 = vpow.pop %v1892
      %v1894 = vmul.f32 %v1769, 1.442695
      %v1895 = vpow.pop %v1894
      %v1896 = vmul.f32 %v1770, 1.442695
      %v1897 = vpow.pop %v1896
      %v1898 = vmul.f32 %v1771, 1.442695
      %v1899 = vpow.pop %v1898
      %v1900 = vadd.f32 %v1773, 1.0
      %v1901 = vadd.f32 %v1775, 1.0
      %v1902 = vadd.f32 %v1777, 1.0
      %v1903 = vadd.f32 %v1779, 1.0
      %v1904 = vadd.f32 %v1781, 1.0
      %v1905 = vadd.f32 %v1783, 1.0
      %v1906 = vadd.f32 %v1785, 1.0
      %v1907 = vadd.f32 %v1787, 1.0
      %v1908 = vadd.f32 %v1789, 1.0
      %v1909 = vadd.f32 %v1791, 1.0
      %v1910 = vadd.f32 %v1793, 1.0
      %v1911 = vadd.f32 %v1795, 1.0
      %v1912 = vadd.f32 %v1797, 1.0
      %v1913 = vadd.f32 %v1799, 1.0
      %v1914 = vadd.f32 %v1801, 1.0
      %v1915 = vadd.f32 %v1803, 1.0
      %v1916 = vadd.f32 %v1805, 1.0
      %v1917 = vadd.f32 %v1807, 1.0
      %v1918 = vadd.f32 %v1809, 1.0
      %v1919 = vadd.f32 %v1811, 1.0
      %v1920 = vadd.f32 %v1813, 1.0
      %v1921 = vadd.f32 %v1815, 1.0
      %v1922 = vadd.f32 %v1817, 1.0
      %v1923 = vadd.f32 %v1819, 1.0
      %v1924 = vadd.f32 %v1821, 1.0
      %v1925 = vadd.f32 %v1823, 1.0
      %v1926 = vadd.f32 %v1825, 1.0
      %v1927 = vadd.f32 %v1827, 1.0
      %v1928 = vadd.f32 %v1829, 1.0
      %v1929 = vadd.f32 %v1831, 1.0
      %v1930 = vadd.f32 %v1833, 1.0
      %v1931 = vadd.f32 %v1835, 1.0
      %v1932 = vadd.f32 %v1837, 1.0
      %v1933 = vadd.f32 %v1839, 1.0
      %v1934 = vadd.f32 %v1841, 1.0
      %v1935 = vadd.f32 %v1843, 1.0
      %v1936 = vadd.f32 %v1845, 1.0
      %v1937 = vadd.f32 %v1847, 1.0
      %v1938 = vadd.f32 %v1849, 1.0
      %v1939 = vadd.f32 %v1851, 1.0
      %v1940 = vadd.f32 %v1853, 1.0
      %v1941 = vadd.f32 %v1855, 1.0
      %v1942 = vadd.f32 %v1857, 1.0
      %v1943 = vadd.f32 %v1859, 1.0
      %v1944 = vadd.f32 %v1861, 1.0
      %v1945 = vadd.f32 %v1863, 1.0
      %v1946 = vadd.f32 %v1865, 1.0
      %v1947 = vadd.f32 %v1867, 1.0
      %v1948 = vadd.f32 %v1869, 1.0
      %v1949 = vadd.f32 %v1871, 1.0
      %v1950 = vadd.f32 %v1873, 1.0
      %v1951 = vadd.f32 %v1875, 1.0
      %v1952 = vadd.f32 %v1877, 1.0
      %v1953 = vadd.f32 %v1879, 1.0
      %v1954 = vadd.f32 %v1881, 1.0
      %v1955 = vadd.f32 %v1883, 1.0
      %v1956 = vadd.f32 %v1885, 1.0
      %v1957 = vadd.f32 %v1887, 1.0
      %v1958 = vadd.f32 %v1889, 1.0
      %v1959 = vadd.f32 %v1891, 1.0
      %v1960 = vadd.f32 %v1893, 1.0
      %v1961 = vadd.f32 %v1895, 1.0
      %v1962 = vadd.f32 %v1897, 1.0
      %v1963 = vadd.f32 %v1899, 1.0
      %v1964 = vrcp.pop %v1900
      %v1965 = vrcp.pop %v1901
      %v1966 = vrcp.pop %v1902
      %v1967 = vrcp.pop %v1903
      %v1968 = vrcp.pop %v1904
      %v1969 = vrcp.pop %v1905
      %v1970 = vrcp.pop %v1906
      %v1971 = vrcp.pop %v1907
      %v1972 = vrcp.pop %v1908
      %v1973 = vrcp.pop %v1909
      %v1974 = vrcp.pop %v1910
      %v1975 = vrcp.pop %v1911
      %v1976 = vrcp.pop %v1912
      %v1977 = vrcp.pop %v1913
      %v1978 = vrcp.pop %v1914
      %v1979 = vrcp.pop %v1915
      %v1980 = vrcp.pop %v1916
      %v1981 = vrcp.pop %v1917
      %v1982 = vrcp.pop %v1918
      %v1983 = vrcp.pop %v1919
      %v1984 = vrcp.pop %v1920
      %v1985 = vrcp.pop %v1921
      %v1986 = vrcp.pop %v1922
      %v1987 = vrcp.pop %v1923
      %v1988 = vrcp.pop %v1924
      %v1989 = vrcp.pop %v1925
      %v1990 = vrcp.pop %v1926
      %v1991 = vrcp.pop %v1927
      %v1992 = vrcp.pop %v1928
      %v1993 = vrcp.pop %v1929
      %v1994 = vrcp.pop %v1930
      %v1995 = vrcp.pop %v1931
      %v1996 = vrcp.pop %v1932
      %v1997 = vrcp.pop %v1933
      %v1998 = vrcp.pop %v1934
      %v1999 = vrcp.pop %v1935
      %v2000 = vrcp.pop %v1936
      %v2001 = vrcp.pop %v1937
      %v2002 = vrcp.pop %v1938
      %v2003 = vrcp.pop %v1939
      %v2004 = vrcp.pop %v1940
      %v2005 = vrcp.pop %v1941
      %v2006 = vrcp.pop %v1942
      %v2007 = vrcp.pop %v1943
      %v2008 = vrcp.pop %v1944
      %v2009 = vrcp.pop %v1945
      %v2010 = vrcp.pop %v1946
      %v2011 = vrcp.pop %v1947
      %v2012 = vrcp.pop %v1948
      %v2013 = vrcp.pop %v1949
      %v2014 = vrcp.pop %v1950
      %v2015 = vrcp.pop %v1951
      %v2016 = vrcp.pop %v1952
      %v2017 = vrcp.pop %v1953
      %v2018 = vrcp.pop %v1954
      %v2019 = vrcp.pop %v1955
      %v2020 = vrcp.pop %v1956
      %v2021 = vrcp.pop %v1957
      %v2022 = vrcp.pop %v1958
      %v2023 = vrcp.pop %v1959
      %v2024 = vrcp.pop %v1960
      %v2025 = vrcp.pop %v1961
      %v2026 = vrcp.pop %v1962
      %v2027 = vrcp.pop %v1963
      %vm2028 = vcmask 7168
      %2029 = vst.msk [vmem:[%s282] sm:$0xff] %vm2028, %v1964
      %2030 = vst.msk [vmem:[%s282 + $0x8] sm:$0xff] %vm2028, %v1965
      %2031 = vst.msk [vmem:[%s282 + $0x10] sm:$0xff] %vm2028, %v1966
      %2032 = vst.msk [vmem:[%s282 + $0x18] sm:$0xff] %vm2028, %v1967
      %2033 = vst.msk [vmem:[%s282 + $0x20] sm:$0xff] %vm2028, %v1968
      %2034 = vst.msk [vmem:[%s282 + $0x28] sm:$0xff] %vm2028, %v1969
      %2035 = vst.msk [vmem:[%s282 + $0x30] sm:$0xff] %vm2028, %v1970
      %2036 = vst.msk [vmem:[%s282 + $0x38] sm:$0xff] %vm2028, %v1971
      %2037 = vst.msk [vmem:[%s282 + $0x40] sm:$0xff] %vm2028, %v1972
      %2038 = vst.msk [vmem:[%s282 + $0x48] sm:$0xff] %vm2028, %v1973
      %2039 = vst.msk [vmem:[%s282 + $0x50] sm:$0xff] %vm2028, %v1974
      %2040 = vst.msk [vmem:[%s282 + $0x58] sm:$0xff] %vm2028, %v1975
      %2041 = vst.msk [vmem:[%s282 + $0x60] sm:$0xff] %vm2028, %v1976
      %2042 = vst.msk [vmem:[%s282 + $0x68] sm:$0xff] %vm2028, %v1977
      %2043 = vst.msk [vmem:[%s282 + $0x70] sm:$0xff] %vm2028, %v1978
      %2044 = vst.msk [vmem:[%s282 + $0x78] sm:$0xff] %vm2028, %v1979
      %2045 = vst.msk [vmem:[%s282 + $0x80] sm:$0xff] %vm2028, %v1980
      %2046 = vst.msk [vmem:[%s282 + $0x88] sm:$0xff] %vm2028, %v1981
      %2047 = vst.msk [vmem:[%s282 + $0x90] sm:$0xff] %vm2028, %v1982
      %2048 = vst.msk [vmem:[%s282 + $0x98] sm:$0xff] %vm2028, %v1983
      %2049 = vst.msk [vmem:[%s282 + $0xa0] sm:$0xff] %vm2028, %v1984
      %2050 = vst.msk [vmem:[%s282 + $0xa8] sm:$0xff] %vm2028, %v1985
      %2051 = vst.msk [vmem:[%s282 + $0xb0] sm:$0xff] %vm2028, %v1986
      %2052 = vst.msk [vmem:[%s282 + $0xb8] sm:$0xff] %vm2028, %v1987
      %2053 = vst.msk [vmem:[%s282 + $0xc0] sm:$0xff] %vm2028, %v1988
      %2054 = vst.msk [vmem:[%s282 + $0xc8] sm:$0xff] %vm2028, %v1989
      %2055 = vst.msk [vmem:[%s282 + $0xd0] sm:$0xff] %vm2028, %v1990
      %2056 = vst.msk [vmem:[%s282 + $0xd8] sm:$0xff] %vm2028, %v1991
      %2057 = vst.msk [vmem:[%s282 + $0xe0] sm:$0xff] %vm2028, %v1992
      %2058 = vst.msk [vmem:[%s282 + $0xe8] sm:$0xff] %vm2028, %v1993
      %2059 = vst.msk [vmem:[%s282 + $0xf0] sm:$0xff] %vm2028, %v1994
      %2060 = vst.msk [vmem:[%s282 + $0xf8] sm:$0xff] %vm2028, %v1995
      %2061 = vst.msk [vmem:[%s282 + $0x100] sm:$0xff] %vm2028, %v1996
      %2062 = vst.msk [vmem:[%s282 + $0x108] sm:$0xff] %vm2028, %v1997
      %2063 = vst.msk [vmem:[%s282 + $0x110] sm:$0xff] %vm2028, %v1998
      %2064 = vst.msk [vmem:[%s282 + $0x118] sm:$0xff] %vm2028, %v1999
      %2065 = vst.msk [vmem:[%s282 + $0x120] sm:$0xff] %vm2028, %v2000
      %2066 = vst.msk [vmem:[%s282 + $0x128] sm:$0xff] %vm2028, %v2001
      %2067 = vst.msk [vmem:[%s282 + $0x130] sm:$0xff] %vm2028, %v2002
      %2068 = vst.msk [vmem:[%s282 + $0x138] sm:$0xff] %vm2028, %v2003
      %2069 = vst.msk [vmem:[%s282 + $0x140] sm:$0xff] %vm2028, %v2004
      %2070 = vst.msk [vmem:[%s282 + $0x148] sm:$0xff] %vm2028, %v2005
      %2071 = vst.msk [vmem:[%s282 + $0x150] sm:$0xff] %vm2028, %v2006
      %2072 = vst.msk [vmem:[%s282 + $0x158] sm:$0xff] %vm2028, %v2007
      %2073 = vst.msk [vmem:[%s282 + $0x160] sm:$0xff] %vm2028, %v2008
      %2074 = vst.msk [vmem:[%s282 + $0x168] sm:$0xff] %vm2028, %v2009
      %2075 = vst.msk [vmem:[%s282 + $0x170] sm:$0xff] %vm2028, %v2010
      %2076 = vst.msk [vmem:[%s282 + $0x178] sm:$0xff] %vm2028, %v2011
      %2077 = vst.msk [vmem:[%s282 + $0x180] sm:$0xff] %vm2028, %v2012
      %2078 = vst.msk [vmem:[%s282 + $0x188] sm:$0xff] %vm2028, %v2013
      %2079 = vst.msk [vmem:[%s282 + $0x190] sm:$0xff] %vm2028, %v2014
      %2080 = vst.msk [vmem:[%s282 + $0x198] sm:$0xff] %vm2028, %v2015
      %2081 = vst.msk [vmem:[%s282 + $0x1a0] sm:$0xff] %vm2028, %v2016
      %2082 = vst.msk [vmem:[%s282 + $0x1a8] sm:$0xff] %vm2028, %v2017
      %2083 = vst.msk [vmem:[%s282 + $0x1b0] sm:$0xff] %vm2028, %v2018
      %2084 = vst.msk [vmem:[%s282 + $0x1b8] sm:$0xff] %vm2028, %v2019
      %2085 = vst.msk [vmem:[%s282 + $0x1c0] sm:$0xff] %vm2028, %v2020
      %2086 = vst.msk [vmem:[%s282 + $0x1c8] sm:$0xff] %vm2028, %v2021
      %2087 = vst.msk [vmem:[%s282 + $0x1d0] sm:$0xff] %vm2028, %v2022
      %2088 = vst.msk [vmem:[%s282 + $0x1d8] sm:$0xff] %vm2028, %v2023
      %2089 = vst.msk [vmem:[%s282 + $0x1e0] sm:$0xff] %vm2028, %v2024
      %2090 = vst.msk [vmem:[%s282 + $0x1e8] sm:$0xff] %vm2028, %v2025
      %2091 = vst.msk [vmem:[%s282 + $0x1f0] sm:$0xff] %vm2028, %v2026
      %2092 = vst.msk [vmem:[%s282 + $0x1f8] sm:$0xff] %vm2028, %v2027
      %s2093 = smul.u32 64, %s20
      %p2094 = scmp.lt.s32.totalorder %s2093, 127
      %s2095 = scalar_select %p2094, %s2093, 127
      %s2096 = smul.addr %s2095, 8
      %s2097 = scalar_lea.vmem %s7, %s2096
      // Predicated region
      $region49: #{tpu_custom_call.1} parent=47 // pred_check
        %p2098 = pneg %p190
      $region50: #{tpu_custom_call.1} parent=47 // pred_check_branch
        %2100 = sbr.rel (%p2098) target = $region52
      $region51: #{tpu_custom_call.1} parent=47 // pred_region
        %s2101 = smul.u32 64, %s20
      $region52: #{tpu_custom_call.1} parent=47 // pred_fallthru
        _
    $region48: #{tpu_custom_call.1} parent=5 // pred_fallthru
      _
    %p2102 = scmp.le.s32.totalorder 2, %s15
    // Predicated region
    $region53: #{tpu_custom_call.1} parent=5 // pred_check
      %p2103 = pneg %p2102
    $region54: #{tpu_custom_call.1} parent=5 // pred_check_branch
      %2105 = sbr.rel (%p2103) target = $region56
    $region55: #{tpu_custom_call.1} parent=5 // pred_region
      %s2106 = ssub.s32 %s15, 2
      // Predicated region
      $region57: #{tpu_custom_call.1} parent=55 // pred_check
        %p2107 = pneg %p196
      $region58: #{tpu_custom_call.1} parent=55 // pred_check_branch
        %2109 = sbr.rel (%p2107) target = $region60
      $region59: #{tpu_custom_call.1} parent=55 // pred_region
        %s2110 = smul.u32 64, %s21
        %p2111 = scmp.lt.s32.totalorder %s2110, 127
        %s2112 = scalar_select %p2111, %s2110, 127
        %s2113 = smul.addr %s2112, 8
        %s2114 = scalar_lea.vmem %s7, %s2113
      $region60: #{tpu_custom_call.1} parent=55 // pred_fallthru
        _
    $region56: #{tpu_custom_call.1} parent=5 // pred_fallthru
      _
  $region6: #{tpu_custom_call.1} parent=0 // loop_footer
    %s19 = sadd.s32 1, %s15
  $region7: #{tpu_custom_call.1} parent=0 // loop_footer_branch
    %14 = sbr.rel target = $region3
  $region8: #{tpu_custom_call.1} parent=0 // loop_exit
    _

</llo_original>
